<compile_context>
chip_gen: v7x
topology: tpu7x:2x2x1
jax: 0.10.0
libtpu: 0.0.40
codegen_flags: <defaults>
</compile_context>

<pallas_src>
import jax
import jax.numpy as jnp
from jax.experimental import pallas as pl
from jax.experimental.pallas import tpu as pltpu

# ----------------------------- Superfloat config -----------------------------
SF_BITS = 16
SF_MANTISSA_BITS = SF_BITS - 1
SF_MAX_VAL = 1.0 - 2.0 ** (-SF_MANTISSA_BITS)        # 1 - 2^-15
SF_SCALE = 2.0 ** SF_MANTISSA_BITS - 1.0             # 2^15 - 1
_SF_ENC = SF_SCALE / SF_MAX_VAL                      # fused encode constant
_SF_NEG_DEC = -(SF_MAX_VAL / SF_SCALE)               # decode constant, (2*sign-1) flip folded in


def _sf_quantize(v):
    """Superfloat.tensor_quantize (encode + decode), reproduced exactly.

    Reference math:
        mantissa = floor(|clip(v)| * SCALE / MAX);  sign_bit = (clip(v) < 0)
        decoded  = mantissa / SCALE * MAX * (2*sign_bit - 1)
    (2*sign_bit - 1) is +1 for negative inputs and -1 for positive inputs, i.e. a sign
    flip relative to the input. Since floor(|x|) * (-sign(x)) == -trunc(x), the whole
    thing collapses to clip -> scale -> trunc -> negated-scale (pure VPU ops, no
    abs / compare / select).
    """
    clipped = jnp.clip(v, -SF_MAX_VAL, SF_MAX_VAL)
    return jnp.trunc(clipped * _SF_ENC) * _SF_NEG_DEC


# --------------------------------- Kernel ------------------------------------
def ffn_kernel(x_ref, w1_ref, b1_ref, w2_ref, b2_ref, o_ref, xq_ref, acc_ref):
    """One (token-tile i, FF-tile j) step of the fused quantized FFN.

    x_ref  : [tm, H]      activation tile (same block for all j)
    w1_ref : [H, tn]      pre-quantized, pre-transposed W1 tile   (FF = N axis)
    b1_ref : [1, tn]      bias-1 tile
    w2_ref : [tn, H]      pre-quantized, pre-transposed W2 tile   (FF = K axis)
    b2_ref : [1, H]       bias-2 (full)
    o_ref  : [tm, H]      output tile (accumulator-resident across j)
    xq_ref : [tm, H]      VMEM scratch: quantized input tile (computed once per i)
    acc_ref: [tm, H]      VMEM scratch: f32 accumulator for matmul2
    """
    j = pl.program_id(1)

    @pl.when(j == 0)
    def _init():
        xq_ref[...] = _sf_quantize(x_ref[...])          # quantize input once per token tile
        acc_ref[...] = jnp.zeros_like(acc_ref)

    # Linear(H -> 4H), FF slice j, then quantize (bias NOT quantized, per reference).
    h = jnp.dot(xq_ref[...], w1_ref[...],
                preferred_element_type=jnp.float32) + b1_ref[...]
    h = _sf_quantize(h)

    # SiLU, then quantize.
    s = _sf_quantize(h * jax.nn.sigmoid(h))

    # Partial sum of Linear(4H -> H): FF is the reduction axis here.
    acc_ref[...] += jnp.dot(s, w2_ref[...], preferred_element_type=jnp.float32)

    @pl.when(j == pl.num_programs(1) - 1)
    def _finalize():
        # Bias-2 add and final quantization once, after the reduction completes.
        o_ref[...] = _sf_quantize(acc_ref[...] + b2_ref[...])


# --------------------------------- Wrapper -----------------------------------
def quantized_llama_forward(x, w1, b1, w2, b2, *, tm=64, tn_ff=256):
    """x: [B, S, H] float32; w1: [FF, H]; b1: [FF]; w2: [H, FF]; b2: [H]."""
    B, S, H = x.shape
    FF = w1.shape[0]
    assert H % 128 == 0, "H must be lane-aligned (multiple of 128)"
    assert tm % 8 == 0, "token tile must be sublane-aligned"
    tn_ff = min(tn_ff, FF)
    assert FF % tn_ff == 0 and tn_ff % 128 == 0, "FF tiling must be lane-aligned"

    tokens = B * S
    tokens_p = ((tokens + tm - 1) // tm) * tm
    x2d = x.reshape(tokens, H)
    if tokens_p != tokens:
        x2d = jnp.pad(x2d, ((0, tokens_p - tokens), (0, 0)))

    # Weight quantization hoisted out of the kernel (static per call — the module mutates
    # layer.weight.data before use) and pre-transposed to [in, out] so the MXU is fed
    # directly with no in-kernel transpose.
    w1t = _sf_quantize(w1).T            # [H, FF]
    w2t = _sf_quantize(w2).T            # [FF, H]
    b1_2d = b1.reshape(1, FF)
    b2_2d = b2.reshape(1, H)

    grid = (tokens_p // tm, FF // tn_ff)    # reduction (FF for matmul2) axis last

    cost = pl.CostEstimate(
        flops=2 * 2 * tokens_p * H * FF,                      # two matmuls
        transcendentals=tokens_p * FF,                        # sigmoid
        bytes_accessed=4 * (2 * tokens_p * H + 2 * H * FF + FF + H),
    )

    out = pl.pallas_call(
        ffn_kernel,
        out_shape=jax.ShapeDtypeStruct((tokens_p, H), jnp.float32),
        grid_spec=pltpu.PrefetchScalarGridSpec(
            num_scalar_prefetch=0,
            grid=grid,
            in_specs=[
                pl.BlockSpec((tm, H), lambda i, j: (i, 0)),      # x tile (const over j)
                pl.BlockSpec((H, tn_ff), lambda i, j: (0, j)),   # W1^T tile, streamed
                pl.BlockSpec((1, tn_ff), lambda i, j: (0, j)),   # b1 tile
                pl.BlockSpec((tn_ff, H), lambda i, j: (j, 0)),   # W2^T tile, streamed
                pl.BlockSpec((1, H), lambda i, j: (0, 0)),       # b2 (full)
            ],
            out_specs=pl.BlockSpec((tm, H), lambda i, j: (i, 0)),
            scratch_shapes=[
                pltpu.VMEM((tm, H), jnp.float32),   # xq  (quantized input tile)
                pltpu.VMEM((tm, H), jnp.float32),   # acc (matmul2 accumulator)
            ],
        ),
        compiler_params=pltpu.CompilerParams(
            dimension_semantics=("parallel", "arbitrary"),
            vmem_limit_bytes=32 * 1024 * 1024,
        ),
        cost_estimate=cost,
    )(x2d, w1t, b1_2d, w2t, b2_2d)

    return out[:tokens].reshape(B, S, H)


# ------------------------------- Reference -----------------------------------
def _reference(x, w1, b1, w2, b2):
    q = _sf_quantize
    h = q(x)
    h = q(jnp.einsum("bsh,oh->bso", h, q(w1)) + b1)
    h = q(h * jax.nn.sigmoid(h))
    h = q(jnp.einsum("bsf,hf->bsh", h, q(w2)) + b2)
    return h


if __name__ == "__main__":
    # Small but lane-dense shapes: H multiple of 128, tokens multiple of the token tile.
    B, S, H = 2, 64, 128
    FF = 4 * H  # 512

    key = jax.random.PRNGKey(0)
    kx, kw1, kb1, kw2, kb2 = jax.random.split(key, 5)

    # Input kept mostly inside [-1, 1] so the superfloat clip is meaningful but not dominant.
    x = 0.5 * jax.random.normal(kx, (B, S, H), dtype=jnp.float32)

    # PyTorch nn.Linear default init: U(-1/sqrt(fan_in), 1/sqrt(fan_in))
    lim1 = 1.0 / (H ** 0.5)
    w1 = jax.random.uniform(kw1, (FF, H), jnp.float32, -lim1, lim1)
    b1 = jax.random.uniform(kb1, (FF,), jnp.float32, -lim1, lim1)
    lim2 = 1.0 / (FF ** 0.5)
    w2 = jax.random.uniform(kw2, (H, FF), jnp.float32, -lim2, lim2)
    b2 = jax.random.uniform(kb2, (H,), jnp.float32, -lim2, lim2)

    y = quantized_llama_forward(x, w1, b1, w2, b2)
    y = jax.block_until_ready(y)

    y_ref = _reference(x, w1, b1, w2, b2)
    assert y.shape == (B, S, H)
    # atol absorbs at most a one-quantization-step (~3e-5) boundary flip from
    # MXU-vs-XLA reduction-order differences in the pre-quantization values.
    assert jnp.allclose(y, y_ref, atol=1e-4, rtol=1e-5), "mismatch vs reference"

    # TODO(synk): apply_gradient_hooks (grad masking by out_of_range) is backward-pass
    # only and has no forward Pallas equivalent; it is intentionally omitted.
    print("KERNEL_OK")
</pallas_src>

<mosaic_0001>
module attributes {stable_mosaic.version = 11 : i64} {
  func.func @ffn_kernel(%arg0: i32, %arg1: i32, %arg2: memref<64x128xf32, #tpu.memory_space<vmem>>, %arg3: memref<128x256xf32, #tpu.memory_space<vmem>>, %arg4: memref<1x256xf32, #tpu.memory_space<vmem>>, %arg5: memref<256x128xf32, #tpu.memory_space<vmem>>, %arg6: memref<1x128xf32, #tpu.memory_space<vmem>>, %arg7: memref<64x128xf32, #tpu.memory_space<vmem>>, %arg8: memref<64x128xf32, #tpu.memory_space<vmem>>, %arg9: memref<64x128xf32, #tpu.memory_space<vmem>>) attributes {dimension_semantics = [#tpu.dimension_semantics<parallel>, #tpu.dimension_semantics<arbitrary>], iteration_bounds = array<i64: 2, 2>, scalar_prefetch = 0 : i64, scratch_operands = 2 : i64, tpu.core_type = #tpu.core_type<tc>, window_params = [{transform_indices = @transform_0, window_bounds = array<i64: 64, 128>}, {transform_indices = @transform_1, window_bounds = array<i64: 128, 256>}, {transform_indices = @transform_2, window_bounds = array<i64: 1, 256>}, {transform_indices = @transform_3, window_bounds = array<i64: 256, 128>}, {pipeline_mode = #tpu.pipeline_mode<synchronous>, transform_indices = @transform_4, window_bounds = array<i64: 1, 128>}, {transform_indices = @transform_5, window_bounds = array<i64: 64, 128>}]} {
    %c0_i32 = arith.constant 0 : i32
    %0 = arith.cmpi eq, %arg1, %c0_i32 : i32
    %1 = arith.extui %0 : i1 to i32
    %c0_i32_0 = arith.constant 0 : i32
    %2 = arith.cmpi ne, %1, %c0_i32_0 : i32
    scf.if %2 {
      %c0_25 = arith.constant 0 : index
      %c0_26 = arith.constant 0 : index
      %49 = vector.load %arg2[%c0_25, %c0_26] : memref<64x128xf32, #tpu.memory_space<vmem>>, vector<64x128xf32>
      %cst_27 = arith.constant -0.999969482 : f32
      %cst_28 = arith.constant 0.999969482 : f32
      %50 = vector.broadcast %cst_27 : f32 to vector<64x128xf32>
      %51 = arith.maximumf %50, %49 : vector<64x128xf32>
      %52 = vector.broadcast %cst_28 : f32 to vector<64x128xf32>
      %53 = arith.minimumf %52, %51 : vector<64x128xf32>
      %cst_29 = arith.constant 3.276800e+04 : f32
      %54 = vector.broadcast %cst_29 : f32 to vector<64x128xf32>
      %55 = arith.mulf %53, %54 : vector<64x128xf32>
      %cst_30 = arith.constant 0.000000e+00 : f32
      %56 = vector.broadcast %cst_30 : f32 to vector<64x128xf32>
      %57 = arith.cmpf olt, %55, %56 : vector<64x128xf32>
      %58 = math.ceil %55 : vector<64x128xf32>
      %59 = math.floor %55 : vector<64x128xf32>
      %60 = arith.select %57, %58, %59 : vector<64x128xi1>, vector<64x128xf32>
      %cst_31 = arith.constant -3.05175781E-5 : f32
      %61 = vector.broadcast %cst_31 : f32 to vector<64x128xf32>
      %62 = arith.mulf %60, %61 : vector<64x128xf32>
      %c0_32 = arith.constant 0 : index
      %c0_33 = arith.constant 0 : index
      %63 = vector.load %arg8[%c0_32, %c0_33] : memref<64x128xf32, #tpu.memory_space<vmem>>, vector<64x128xf32>
      tpu.vector_store %arg8[%c0_32, %c0_33], %62 {strides = array<i32>} : memref<64x128xf32, #tpu.memory_space<vmem>>, vector<64x128xf32>,
      %cst_34 = arith.constant 0.000000e+00 : f32
      %64 = vector.broadcast %cst_34 : f32 to vector<64x128xf32>
      %c0_35 = arith.constant 0 : index
      %c0_36 = arith.constant 0 : index
      %65 = vector.load %arg9[%c0_35, %c0_36] : memref<64x128xf32, #tpu.memory_space<vmem>>, vector<64x128xf32>
      tpu.vector_store %arg9[%c0_35, %c0_36], %64 {strides = array<i32>} : memref<64x128xf32, #tpu.memory_space<vmem>>, vector<64x128xf32>,
    } else {
    }
    %c0 = arith.constant 0 : index
    %c0_1 = arith.constant 0 : index
    %3 = vector.load %arg8[%c0, %c0_1] : memref<64x128xf32, #tpu.memory_space<vmem>>, vector<64x128xf32>
    %c0_2 = arith.constant 0 : index
    %c0_3 = arith.constant 0 : index
    %4 = vector.load %arg3[%c0_2, %c0_3] : memref<128x256xf32, #tpu.memory_space<vmem>>, vector<128x256xf32>
    %cst = arith.constant dense<0.000000e+00> : vector<64x256xf32>
    %5 = tpu.matmul %3, %4, %cst {dimension_numbers = #tpu.dot_dimension_numbers<[1], [0], [0], [1], [0, 0, 1, 1], [], []>} : vector<64x128xf32>, vector<128x256xf32>, vector<64x256xf32> -> vector<64x256xf32>
    %c0_4 = arith.constant 0 : index
    %c0_5 = arith.constant 0 : index
    %6 = vector.load %arg4[%c0_4, %c0_5] : memref<1x256xf32, #tpu.memory_space<vmem>>, vector<1x256xf32>
    %7 = vector.broadcast %6 : vector<1x256xf32> to vector<64x256xf32>
    %8 = arith.addf %5, %7 : vector<64x256xf32>
    %cst_6 = arith.constant -0.999969482 : f32
    %cst_7 = arith.constant 0.999969482 : f32
    %9 = vector.broadcast %cst_6 : f32 to vector<64x256xf32>
    %10 = arith.maximumf %9, %8 : vector<64x256xf32>
    %11 = vector.broadcast %cst_7 : f32 to vector<64x256xf32>
    %12 = arith.minimumf %11, %10 : vector<64x256xf32>
    %cst_8 = arith.constant 3.276800e+04 : f32
    %13 = vector.broadcast %cst_8 : f32 to vector<64x256xf32>
    %14 = arith.mulf %12, %13 : vector<64x256xf32>
    %cst_9 = arith.constant 0.000000e+00 : f32
    %15 = vector.broadcast %cst_9 : f32 to vector<64x256xf32>
    %16 = arith.cmpf olt, %14, %15 : vector<64x256xf32>
    %17 = math.ceil %14 : vector<64x256xf32>
    %18 = math.floor %14 : vector<64x256xf32>
    %19 = arith.select %16, %17, %18 : vector<64x256xi1>, vector<64x256xf32>
    %cst_10 = arith.constant -3.05175781E-5 : f32
    %20 = vector.broadcast %cst_10 : f32 to vector<64x256xf32>
    %21 = arith.mulf %19, %20 : vector<64x256xf32>
    %22 = arith.negf %21 : vector<64x256xf32>
    %23 = math.exp %22 : vector<64x256xf32>
    %cst_11 = arith.constant 1.000000e+00 : f32
    %24 = vector.broadcast %cst_11 : f32 to vector<64x256xf32>
    %25 = arith.addf %24, %23 : vector<64x256xf32>
    %26 = arith.divf %24, %25 : vector<64x256xf32>
    %27 = arith.mulf %21, %26 : vector<64x256xf32>
    %cst_12 = arith.constant -0.999969482 : f32
    %cst_13 = arith.constant 0.999969482 : f32
    %28 = vector.broadcast %cst_12 : f32 to vector<64x256xf32>
    %29 = arith.maximumf %28, %27 : vector<64x256xf32>
    %30 = vector.broadcast %cst_13 : f32 to vector<64x256xf32>
    %31 = arith.minimumf %30, %29 : vector<64x256xf32>
    %cst_14 = arith.constant 3.276800e+04 : f32
    %32 = vector.broadcast %cst_14 : f32 to vector<64x256xf32>
    %33 = arith.mulf %31, %32 : vector<64x256xf32>
    %cst_15 = arith.constant 0.000000e+00 : f32
    %34 = vector.broadcast %cst_15 : f32 to vector<64x256xf32>
    %35 = arith.cmpf olt, %33, %34 : vector<64x256xf32>
    %36 = math.ceil %33 : vector<64x256xf32>
    %37 = math.floor %33 : vector<64x256xf32>
    %38 = arith.select %35, %36, %37 : vector<64x256xi1>, vector<64x256xf32>
    %cst_16 = arith.constant -3.05175781E-5 : f32
    %39 = vector.broadcast %cst_16 : f32 to vector<64x256xf32>
    %40 = arith.mulf %38, %39 : vector<64x256xf32>
    %c0_17 = arith.constant 0 : index
    %c0_18 = arith.constant 0 : index
    %41 = vector.load %arg9[%c0_17, %c0_18] : memref<64x128xf32, #tpu.memory_space<vmem>>, vector<64x128xf32>
    %c0_19 = arith.constant 0 : index
    %c0_20 = arith.constant 0 : index
    %42 = vector.load %arg5[%c0_19, %c0_20] : memref<256x128xf32, #tpu.memory_space<vmem>>, vector<256x128xf32>
    %cst_21 = arith.constant dense<0.000000e+00> : vector<64x128xf32>
    %43 = tpu.matmul %40, %42, %cst_21 {dimension_numbers = #tpu.dot_dimension_numbers<[1], [0], [0], [1], [0, 0, 1, 1], [], []>} : vector<64x256xf32>, vector<256x128xf32>, vector<64x128xf32> -> vector<64x128xf32>
    %44 = arith.addf %41, %43 : vector<64x128xf32>
    %c0_22 = arith.constant 0 : index
    %c0_23 = arith.constant 0 : index
    %45 = vector.load %arg9[%c0_22, %c0_23] : memref<64x128xf32, #tpu.memory_space<vmem>>, vector<64x128xf32>
    tpu.vector_store %arg9[%c0_22, %c0_23], %44 {strides = array<i32>} : memref<64x128xf32, #tpu.memory_space<vmem>>, vector<64x128xf32>,
    %c1_i32 = arith.constant 1 : i32
    %46 = arith.cmpi eq, %arg1, %c1_i32 : i32
    %47 = arith.extui %46 : i1 to i32
    %c0_i32_24 = arith.constant 0 : i32
    %48 = arith.cmpi ne, %47, %c0_i32_24 : i32
    scf.if %48 {
      %c0_25 = arith.constant 0 : index
      %c0_26 = arith.constant 0 : index
      %49 = vector.load %arg9[%c0_25, %c0_26] : memref<64x128xf32, #tpu.memory_space<vmem>>, vector<64x128xf32>
      %c0_27 = arith.constant 0 : index
      %c0_28 = arith.constant 0 : index
      %50 = vector.load %arg6[%c0_27, %c0_28] : memref<1x128xf32, #tpu.memory_space<vmem>>, vector<1x128xf32>
      %51 = vector.broadcast %50 : vector<1x128xf32> to vector<64x128xf32>
      %52 = arith.addf %49, %51 : vector<64x128xf32>
      %cst_29 = arith.constant -0.999969482 : f32
      %cst_30 = arith.constant 0.999969482 : f32
      %53 = vector.broadcast %cst_29 : f32 to vector<64x128xf32>
      %54 = arith.maximumf %53, %52 : vector<64x128xf32>
      %55 = vector.broadcast %cst_30 : f32 to vector<64x128xf32>
      %56 = arith.minimumf %55, %54 : vector<64x128xf32>
      %cst_31 = arith.constant 3.276800e+04 : f32
      %57 = vector.broadcast %cst_31 : f32 to vector<64x128xf32>
      %58 = arith.mulf %56, %57 : vector<64x128xf32>
      %cst_32 = arith.constant 0.000000e+00 : f32
      %59 = vector.broadcast %cst_32 : f32 to vector<64x128xf32>
      %60 = arith.cmpf olt, %58, %59 : vector<64x128xf32>
      %61 = math.ceil %58 : vector<64x128xf32>
      %62 = math.floor %58 : vector<64x128xf32>
      %63 = arith.select %60, %61, %62 : vector<64x128xi1>, vector<64x128xf32>
      %cst_33 = arith.constant -3.05175781E-5 : f32
      %64 = vector.broadcast %cst_33 : f32 to vector<64x128xf32>
      %65 = arith.mulf %63, %64 : vector<64x128xf32>
      %c0_34 = arith.constant 0 : index
      %c0_35 = arith.constant 0 : index
      %66 = vector.load %arg7[%c0_34, %c0_35] : memref<64x128xf32, #tpu.memory_space<vmem>>, vector<64x128xf32>
      tpu.vector_store %arg7[%c0_34, %c0_35], %65 {strides = array<i32>} : memref<64x128xf32, #tpu.memory_space<vmem>>, vector<64x128xf32>,
    } else {
    }
    return
  }
  func.func @transform_0(%arg0: i32, %arg1: i32) -> (i32, i32) {
    %c0_i32 = arith.constant 0 : i32
    %c0_i32_0 = arith.constant 0 : i32
    return %arg0, %c0_i32 : i32, i32
  }
  func.func @transform_1(%arg0: i32, %arg1: i32) -> (i32, i32) {
    %c0_i32 = arith.constant 0 : i32
    %c0_i32_0 = arith.constant 0 : i32
    return %c0_i32, %arg1 : i32, i32
  }
  func.func @transform_2(%arg0: i32, %arg1: i32) -> (i32, i32) {
    %c0_i32 = arith.constant 0 : i32
    %c0_i32_0 = arith.constant 0 : i32
    return %c0_i32, %arg1 : i32, i32
  }
  func.func @transform_3(%arg0: i32, %arg1: i32) -> (i32, i32) {
    %c0_i32 = arith.constant 0 : i32
    %c0_i32_0 = arith.constant 0 : i32
    return %arg1, %c0_i32 : i32, i32
  }
  func.func @transform_4(%arg0: i32, %arg1: i32) -> (i32, i32) {
    %c0_i32 = arith.constant 0 : i32
    %c0_i32_0 = arith.constant 0 : i32
    %c0_i32_1 = arith.constant 0 : i32
    return %c0_i32, %c0_i32_0 : i32, i32
  }
  func.func @transform_5(%arg0: i32, %arg1: i32) -> (i32, i32) {
    %c0_i32 = arith.constant 0 : i32
    %c0_i32_0 = arith.constant 0 : i32
    return %arg0, %c0_i32 : i32, i32
  }
}

</mosaic_0001>

<llo_original>
// kernel: tpu_custom_call.1
$region0: #{tpu_custom_call.1}
  #allocation0 [shape = 'u32[]', space=smem, size = 0x4, offset = 0x4, fixed_abs, tag = 'smem constant byte address 0x4 - core index']
  #allocation1 [shape = 'u32[144,128]{1,0:T(1,128)}', space=vmem, size = 0x12000, scoped, tag = 'internal scratch']
  #allocation2 [shape = 'f32[64,128]{1,0:T(8,128)}', space=vmem, size = 0x8000, scoped, tag = 'scratch operand']
  #allocation3 [shape = 'f32[64,128]{1,0:T(8,128)}', space=vmem, size = 0x8000, scoped, tag = 'scratch operand']
  %s0 = inlined_call_operand.hbm [shape: f32[128,128], index: 0, kind: input, shape index: {}]
  %s1 = inlined_call_operand.hbm [shape: f32[128,512], index: 1, kind: input, shape index: {}]
  %s2 = inlined_call_operand.vmem [shape: f32[1,512], index: 2, kind: input, shape index: {}]
  %s3 = inlined_call_operand.hbm [shape: f32[512,128], index: 3, kind: input, shape index: {}]
  %s4 = inlined_call_operand.vmem [shape: f32[1,128], index: 4, kind: input, shape index: {}]
  %s5 = inlined_call_operand.hbm [shape: f32[128,128], index: 5, kind: output, shape index: {}]
  %s6 = sld [smem:[#allocation0]]
  $region73: #{tpu_custom_call.1} parent=0
    _
  %s8 = ssub.s32 1, %s6
  %s9 = scalar_select 0, %s8, %s6
  $region1: #{tpu_custom_call.1} parent=0
    #allocation4 [shape = 'u8[65536]{0}', space=vmem, size = 0x10000, scoped, tag = 'input window, operand 0']
    #allocation5 [shape = 's32[2]{0}', space=sflag, size = 0x8, scoped, tag = 'scoped memory for tpu_custom_call.1']
    #allocation6 [shape = 's32[2]{0}', space=sflag, size = 0x8, scoped, tag = 'scoped memory for tpu_custom_call.1']
    #allocation7 [shape = 'u8[262144]{0}', space=vmem, size = 0x40000, scoped, tag = 'input window, operand 1']
    #allocation8 [shape = 's32[2]{0}', space=sflag, size = 0x8, scoped, tag = 'scoped memory for tpu_custom_call.1']
    #allocation9 [shape = 'u8[262144]{0}', space=vmem, size = 0x40000, scoped, tag = 'input window, operand 3']
    #allocation10 [shape = 'u8[65536]{0}', space=vmem, size = 0x10000, scoped, tag = 'output window, operand 0']
    %10 = vsyncpa [#allocation5], 0
    %s11 = scalar_lea.sflag [#allocation5], 1
    %12 = vsyncpa %s11, 0
    %13 = vsyncpa [#allocation8], 0
    %s14 = scalar_lea.sflag [#allocation8], 1
    %15 = vsyncpa %s14, 0
    %16 = vsyncpa [#allocation6], 0
    %s17 = scalar_lea.sflag [#allocation6], 1
    %18 = vsyncpa %s17, 0
    loop: start=0, step=1, limit=6
    $region2: #{tpu_custom_call.1} parent=1 // loop_pre_header
      _
    $region3: #{tpu_custom_call.1} parent=1 // loop_header
      %s20 = sphi 0, %s24
      %p21 = scmp.ge.s32.totalorder %s20, 6
      %s27 = sphi 0, %s39
      %s28 = sphi 0, %s35
      %s29 = sphi 0, %s27
      %s30 = sphi 0, %s28
      %s31 = sphi 0, %s29
      %s32 = sphi 0, %s30
      %s42 = sphi 0, %s44
      %s45 = sphi 0, %s42
      %s46 = sphi 0, %s45
      %s62 = sphi 0, %s46
      %s68 = sphi 0, %s70
      %s71 = sphi 0, %s68
      %s72 = sphi 0, %s71
      %s88 = sphi 0, %s72
      %s94 = sphi 0, %s96
      %s97 = sphi 0, %s94
      %s98 = sphi 0, %s97
      %s114 = sphi 0, %s98
      %s120 = sphi 0, %s122
      %s123 = sphi 0, %s120
      %s124 = sphi 0, %s123
      %s140 = sphi 0, %s124
      %s144 = sphi 0, %s144
      %s146 = sphi 0, %s144
      %s147 = sphi 0, %s146
      %s161 = sphi 0, %s147
      %s167 = sphi 0, %s169
      %s170 = sphi 0, %s167
      %s171 = sphi 0, %s170
      %s187 = sphi 0, %s171
    $region4: #{tpu_custom_call.1} parent=1 // loop_header_branch
      %23 = sbr.rel (%p21) target = $region8
    $region5: #{tpu_custom_call.1} parent=1 // loop_body
      %s25 = ssub.s32 %s20, 1
      %s26 = ssub.s32 %s20, 2
      %s33 = sadd.s32 1, %s28
      %p34 = scmp.ge.s32.totalorder %s33, 2
      %s35 = scalar_select %p34, 0, %s33
      %s36 = sadd.s32 1, %s27
      %s37 = scalar_select %p34, %s36, %s27
      %p38 = scmp.ge.s32.totalorder %s37, 2
      %s39 = scalar_select %p38, 0, %s37
      %s40 = ssub.s32 %s27, %s39
      %p41 = scmp.eq.s32.totalorder %s40, 0
      %s43 = sadd.s32 %s42, 1
      %s44 = scalar_select %p41, %s42, %s43
      %p47 = pneg %p41
      %p48 = scmp.eq.s32.totalorder %s20, 3
      %p49 = por %p47, %p48
      %p50 = scmp.ne.s32.totalorder %s42, %s45
      %p51 = scmp.eq.s32.totalorder %s20, 0
      %p52 = por %p50, %p51
      %p53 = scmp.ne.s32.totalorder %s42, %s45
      %p54 = scmp.eq.s32.totalorder %s25, 3
      %p55 = por %p53, %p54
      %p56 = scmp.ne.s32.totalorder %s45, %s46
      %p57 = scmp.eq.s32.totalorder %s25, 0
      %p58 = por %p56, %p57
      %p59 = scmp.ne.s32.totalorder %s45, %s46
      %p60 = scmp.eq.s32.totalorder %s26, 3
      %p61 = por %p59, %p60
      %p63 = scmp.ne.s32.totalorder %s46, %s62
      %p64 = scmp.eq.s32.totalorder %s26, 0
      %p65 = por %p63, %p64
      %s66 = ssub.s32 %s28, %s35
      %p67 = scmp.eq.s32.totalorder %s66, 0
      %s69 = sadd.s32 %s68, 1
      %s70 = scalar_select %p67, %s68, %s69
      %p73 = pneg %p67
      %p74 = scmp.eq.s32.totalorder %s20, 3
      %p75 = por %p73, %p74
      %p76 = scmp.ne.s32.totalorder %s68, %s71
      %p77 = scmp.eq.s32.totalorder %s20, 0
      %p78 = por %p76, %p77
      %p79 = scmp.ne.s32.totalorder %s68, %s71
      %p80 = scmp.eq.s32.totalorder %s25, 3
      %p81 = por %p79, %p80
      %p82 = scmp.ne.s32.totalorder %s71, %s72
      %p83 = scmp.eq.s32.totalorder %s25, 0
      %p84 = por %p82, %p83
      %p85 = scmp.ne.s32.totalorder %s71, %s72
      %p86 = scmp.eq.s32.totalorder %s26, 3
      %p87 = por %p85, %p86
      %p89 = scmp.ne.s32.totalorder %s72, %s88
      %p90 = scmp.eq.s32.totalorder %s26, 0
      %p91 = por %p89, %p90
      %s92 = ssub.s32 %s28, %s35
      %p93 = scmp.eq.s32.totalorder %s92, 0
      %s95 = sadd.s32 %s94, 1
      %s96 = scalar_select %p93, %s94, %s95
      %p99 = pneg %p93
      %p100 = scmp.eq.s32.totalorder %s20, 3
      %p101 = por %p99, %p100
      %p102 = scmp.ne.s32.totalorder %s94, %s97
      %p103 = scmp.eq.s32.totalorder %s20, 0
      %p104 = por %p102, %p103
      %p105 = scmp.ne.s32.totalorder %s94, %s97
      %p106 = scmp.eq.s32.totalorder %s25, 3
      %p107 = por %p105, %p106
      %p108 = scmp.ne.s32.totalorder %s97, %s98
      %p109 = scmp.eq.s32.totalorder %s25, 0
      %p110 = por %p108, %p109
      %p111 = scmp.ne.s32.totalorder %s97, %s98
      %p112 = scmp.eq.s32.totalorder %s26, 3
      %p113 = por %p111, %p112
      %p115 = scmp.ne.s32.totalorder %s98, %s114
      %p116 = scmp.eq.s32.totalorder %s26, 0
      %p117 = por %p115, %p116
      %s118 = ssub.s32 %s28, %s35
      %p119 = scmp.eq.s32.totalorder %s118, 0
      %s121 = sadd.s32 %s120, 1
      %s122 = scalar_select %p119, %s120, %s121
      %p125 = pneg %p119
      %p126 = scmp.eq.s32.totalorder %s20, 3
      %p127 = por %p125, %p126
      %p128 = scmp.ne.s32.totalorder %s120, %s123
      %p129 = scmp.eq.s32.totalorder %s20, 0
      %p130 = por %p128, %p129
      %p131 = scmp.ne.s32.totalorder %s120, %s123
      %p132 = scmp.eq.s32.totalorder %s25, 3
      %p133 = por %p131, %p132
      %p134 = scmp.ne.s32.totalorder %s123, %s124
      %p135 = scmp.eq.s32.totalorder %s25, 0
      %p136 = por %p134, %p135
      %p137 = scmp.ne.s32.totalorder %s123, %s124
      %p138 = scmp.eq.s32.totalorder %s26, 3
      %p139 = por %p137, %p138
      %p141 = scmp.ne.s32.totalorder %s124, %s140
      %p142 = scmp.eq.s32.totalorder %s26, 0
      %p143 = por %p141, %p142
      %s145 = sadd.s32 %s144, 1
      %p148 = scmp.eq.s32.totalorder %s20, 3
      %p149 = scmp.ne.s32.totalorder %s144, %s146
      %p150 = scmp.eq.s32.totalorder %s20, 0
      %p151 = por %p149, %p150
      %p152 = scmp.ne.s32.totalorder %s144, %s146
      %p153 = scmp.eq.s32.totalorder %s25, 3
      %p154 = por %p152, %p153
      %p155 = scmp.ne.s32.totalorder %s146, %s147
      %p156 = scmp.eq.s32.totalorder %s25, 0
      %p157 = por %p155, %p156
      %p158 = scmp.ne.s32.totalorder %s146, %s147
      %p159 = scmp.eq.s32.totalorder %s26, 3
      %p160 = por %p158, %p159
      %p162 = scmp.ne.s32.totalorder %s147, %s161
      %p163 = scmp.eq.s32.totalorder %s26, 0
      %p164 = por %p162, %p163
      %s165 = ssub.s32 %s27, %s39
      %p166 = scmp.eq.s32.totalorder %s165, 0
      %s168 = sadd.s32 %s167, 1
      %s169 = scalar_select %p166, %s167, %s168
      %p172 = pneg %p166
      %p173 = scmp.eq.s32.totalorder %s20, 3
      %p174 = por %p172, %p173
      %p175 = scmp.ne.s32.totalorder %s167, %s170
      %p176 = scmp.eq.s32.totalorder %s20, 0
      %p177 = por %p175, %p176
      %p178 = scmp.ne.s32.totalorder %s167, %s170
      %p179 = scmp.eq.s32.totalorder %s25, 3
      %p180 = por %p178, %p179
      %p181 = scmp.ne.s32.totalorder %s170, %s171
      %p182 = scmp.eq.s32.totalorder %s25, 0
      %p183 = por %p181, %p182
      %p184 = scmp.ne.s32.totalorder %s170, %s171
      %p185 = scmp.eq.s32.totalorder %s26, 3
      %p186 = por %p184, %p185
      %p188 = scmp.ne.s32.totalorder %s171, %s187
      %p189 = scmp.eq.s32.totalorder %s26, 0
      %p190 = por %p188, %p189
      %p191 = scmp.le.s32.totalorder 1, %s20
      %p192 = scmp.lt.s32.totalorder %s20, 5
      %p193 = pnand %p191, %p192
      %p194 = pneg %p193
      // Predicated region
      $region9: #{tpu_custom_call.1} parent=5 // pred_check
        _
      $region10: #{tpu_custom_call.1} parent=5 // pred_check_branch
        %196 = sbr.rel (%p193) target = $region12
      $region11: #{tpu_custom_call.1} parent=5 // pred_region
        %s197 = ssub.s32 %s20, 1
        // Predicated region
        $region13: #{tpu_custom_call.1} parent=11 // pred_check
          %p198 = pneg %p157
        $region14: #{tpu_custom_call.1} parent=11 // pred_check_branch
          %200 = sbr.rel (%p198) target = $region16
        $region15: #{tpu_custom_call.1} parent=11 // pred_region
          _
        $region16: #{tpu_custom_call.1} parent=11 // pred_fallthru
          _
      $region12: #{tpu_custom_call.1} parent=5 // pred_fallthru
        _
      %p201 = scmp.lt.s32.totalorder %s20, 4
      // Predicated region
      $region17: #{tpu_custom_call.1} parent=5 // pred_check
        %p202 = pneg %p201
      $region18: #{tpu_custom_call.1} parent=5 // pred_check_branch
        %204 = sbr.rel (%p202) target = $region20
      $region19: #{tpu_custom_call.1} parent=5 // pred_region
        // Predicated region
        $region21: #{tpu_custom_call.1} parent=19 // pred_check
          %p205 = pneg %p52
        $region22: #{tpu_custom_call.1} parent=19 // pred_check_branch
          %207 = sbr.rel (%p205) target = $region24
        $region23: #{tpu_custom_call.1} parent=19 // pred_region
          %s208 = sand.u32 %s42, 1
          %s209 = scalar_lea.sflag [#allocation5], %s208
          %s210 = sand.u32 %s42, 1
          %s211 = smul.addr %s210, 64
          %s212 = scalar_lea.vmem [#allocation4], %s211
          %s213 = smul.u32 8, %s27
          %s215 = ssub.s32 1024, 1024
          %216 = vsyncadd %s209, %s215
          %s217 = smul.addr %s213, 128
          %s218 = scalar_lea.hbm %s0, %s217
          %s219 = sshll.u32 %s212, 4
          %s220 = int_to_ptr.vmem [resolvable:$true] %s219
          %225 = dma.hbm_to_vmem [thread:$0]  %s218, 1024, %s220, %s209, 128, 128, 8
        $region24: #{tpu_custom_call.1} parent=19 // pred_fallthru
          _
        // Predicated region
        $region25: #{tpu_custom_call.1} parent=19 // pred_check
          %p226 = pneg %p78
        $region26: #{tpu_custom_call.1} parent=19 // pred_check_branch
          %228 = sbr.rel (%p226) target = $region28
        $region27: #{tpu_custom_call.1} parent=19 // pred_region
          %s229 = sand.u32 %s20, 1
          %s230 = scalar_lea.sflag [#allocation8], %s229
          %s231 = sand.u32 %s68, 1
          %s232 = smul.addr %s231, 256
          %s233 = scalar_lea.vmem [#allocation7], %s232
          %s234 = smul.u32 2, %s28
          %s236 = ssub.s32 4096, 4096
          %237 = vsyncadd %s230, %s236
          %s238 = smul.addr %s234, 128
          %s239 = scalar_lea.hbm %s1, %s238
          %s240 = sshll.u32 %s233, 4
          %s241 = int_to_ptr.vmem [resolvable:$true] %s240
          %246 = dma.hbm_to_vmem [thread:$0]  %s239, 4096, %s241, %s230, 512, 256, 16
        $region28: #{tpu_custom_call.1} parent=19 // pred_fallthru
          _
        // Predicated region
        $region29: #{tpu_custom_call.1} parent=19 // pred_check
          %p247 = pneg %p104
        $region30: #{tpu_custom_call.1} parent=19 // pred_check_branch
          %249 = sbr.rel (%p247) target = $region32
        $region31: #{tpu_custom_call.1} parent=19 // pred_region
          %s250 = smul.u32 2, %s28
          %p251 = scmp.lt.s32.totalorder %s250, 3
          %s252 = scalar_select %p251, %s250, 3
          %s253 = scalar_lea.vmem %s2, %s252
          %s254 = smul.u32 2, %s28
        $region32: #{tpu_custom_call.1} parent=19 // pred_fallthru
          _
        // Predicated region
        $region33: #{tpu_custom_call.1} parent=19 // pred_check
          %p255 = pneg %p130
        $region34: #{tpu_custom_call.1} parent=19 // pred_check_branch
          %257 = sbr.rel (%p255) target = $region36
        $region35: #{tpu_custom_call.1} parent=19 // pred_region
          %s258 = sand.u32 %s20, 1
          %s259 = scalar_lea.sflag [#allocation8], %s258
          %s260 = sand.u32 %s120, 1
          %s261 = smul.addr %s260, 256
          %s262 = scalar_lea.vmem [#allocation9], %s261
          %s263 = smul.u32 32, %s28
          %s265 = ssub.s32 4096, 4096
          %266 = vsyncadd %s259, %s265
          %s267 = smul.addr %s263, 128
          %s268 = scalar_lea.hbm %s3, %s267
          %s269 = sshll.u32 %s262, 4
          %s270 = int_to_ptr.vmem [resolvable:$true] %s269
          %275 = dma.hbm_to_vmem [thread:$0]  %s268, 4096, %s270, %s259, 128, 128, 8
        $region36: #{tpu_custom_call.1} parent=19 // pred_fallthru
          _
      $region20: #{tpu_custom_call.1} parent=5 // pred_fallthru
        _
      %p276 = scmp.le.s32.totalorder 1, %s20
      %p277 = scmp.lt.s32.totalorder %s20, 5
      %p278 = pnand %p276, %p277
      %p279 = pneg %p278
      // Predicated region
      $region37: #{tpu_custom_call.1} parent=5 // pred_check
        _
      $region38: #{tpu_custom_call.1} parent=5 // pred_check_branch
        %281 = sbr.rel (%p278) target = $region40
      $region39: #{tpu_custom_call.1} parent=5 // pred_region
        %s282 = ssub.s32 %s20, 1
        %s283 = sand.u32 %s45, 1
        %s284 = scalar_lea.sflag [#allocation5], %s283
        %s285 = sand.u32 %s45, 1
        %s286 = smul.addr %s285, 64
        %s287 = scalar_lea.vmem [#allocation4], %s286
        // Predicated region
        $region41: #{tpu_custom_call.1} parent=39 // pred_check
          %p288 = pneg %p58
        $region42: #{tpu_custom_call.1} parent=39 // pred_check_branch
          %290 = sbr.rel (%p288) target = $region44
        $region43: #{tpu_custom_call.1} parent=39 // pred_region
          %291 = dma.done %s284, 1024
        $region44: #{tpu_custom_call.1} parent=39 // pred_fallthru
          _
        %s292 = sand.u32 %s25, 1
        %s293 = scalar_lea.sflag [#allocation8], %s292
        %s294 = sand.u32 %s71, 1
        %s295 = smul.addr %s294, 256
        %s296 = scalar_lea.vmem [#allocation7], %s295
        // Predicated region
        $region45: #{tpu_custom_call.1} parent=39 // pred_check
          %p297 = pneg %p84
        $region46: #{tpu_custom_call.1} parent=39 // pred_check_branch
          %299 = sbr.rel (%p297) target = $region48
        $region47: #{tpu_custom_call.1} parent=39 // pred_region
          %300 = dma.done %s293, 4096
        $region48: #{tpu_custom_call.1} parent=39 // pred_fallthru
          _
        %s301 = sand.u32 %s25, 1
        %s302 = scalar_lea.sflag [#allocation8], %s301
        %s303 = sand.u32 %s123, 1
        %s304 = smul.addr %s303, 256
        %s305 = scalar_lea.vmem [#allocation9], %s304
        // Predicated region
        $region49: #{tpu_custom_call.1} parent=39 // pred_check
          %p306 = pneg %p136
        $region50: #{tpu_custom_call.1} parent=39 // pred_check_branch
          %308 = sbr.rel (%p306) target = $region52
        $region51: #{tpu_custom_call.1} parent=39 // pred_region
          %309 = dma.done %s302, 4096
        $region52: #{tpu_custom_call.1} parent=39 // pred_fallthru
          _
        %s310 = sand.u32 %s45, 1
        %s311 = scalar_lea.sflag [#allocation5], %s310
        %s312 = sand.u32 %s45, 1
        %s313 = smul.addr %s312, 64
        %s314 = scalar_lea.vmem [#allocation4], %s313
        %p315 = pneg %p58
        %p316 = pneg %p55
        %s317 = sand.u32 %s25, 1
        %s318 = scalar_lea.sflag [#allocation8], %s317
        %s319 = sand.u32 %s71, 1
        %s320 = smul.addr %s319, 256
        %s321 = scalar_lea.vmem [#allocation7], %s320
        %p322 = pneg %p84
        %p323 = pneg %p81
        %s324 = smul.u32 2, %s30
        %p325 = scmp.lt.s32.totalorder %s324, 3
        %s326 = scalar_select %p325, %s324, 3
        %s327 = scalar_lea.vmem %s2, %s326
        %p328 = pneg %p110
        %p329 = pneg %p107
        %s330 = sand.u32 %s25, 1
        %s331 = scalar_lea.sflag [#allocation8], %s330
        %s332 = sand.u32 %s123, 1
        %s333 = smul.addr %s332, 256
        %s334 = scalar_lea.vmem [#allocation9], %s333
        %p335 = pneg %p136
        %p336 = pneg %p133
        %p337 = pneg %p157
        %p338 = pneg %p154
        %p339 = pneg %p183
        %p340 = pneg %p180
        %s341 = sand.u32 %s170, 1
        %s342 = scalar_lea.sflag [#allocation6], %s341
        %s343 = sand.u32 %s170, 1
        %s344 = smul.addr %s343, 64
        %s345 = scalar_lea.vmem [#allocation10], %s344
        %s346 = smul.u32 8, %s29
        %s347 = smul.u32 2, %s30
        %s348 = smul.u32 2, %s30
        %p349 = scmp.lt.s32.totalorder %s348, 3
        %s350 = scalar_select %p349, %s348, 3
        %s351 = scalar_lea.vmem %s2, %s350
        %s352 = smul.u32 2, %s30
        %s353 = smul.u32 32, %s30
        %s354 = smul.u32 8, %s29
        %p355 = scmp.eq.s32.totalorder %s30, 0
        // Predicated region
        $region53: #{tpu_custom_call.1} parent=39 // pred_check
          %p356 = pneg %p355
        $region54: #{tpu_custom_call.1} parent=39 // pred_check_branch
          %358 = sbr.rel (%p356) target = $region56
        $region55: #{tpu_custom_call.1} parent=39 // pred_region
          %v359 = vld [vmem:[%s287] sm:$0xff]
          %v360 = vld [vmem:[%s287 + $0x8] sm:$0xff]
          %v361 = vld [vmem:[%s287 + $0x10] sm:$0xff]
          %v362 = vld [vmem:[%s287 + $0x18] sm:$0xff]
          %v363 = vld [vmem:[%s287 + $0x20] sm:$0xff]
          %v364 = vld [vmem:[%s287 + $0x28] sm:$0xff]
          %v365 = vld [vmem:[%s287 + $0x30] sm:$0xff]
          %v366 = vld [vmem:[%s287 + $0x38] sm:$0xff]
          %v367 = vmax.f32 %v359, -0.9999695
          %v368 = vmax.f32 %v360, -0.9999695
          %v369 = vmax.f32 %v361, -0.9999695
          %v370 = vmax.f32 %v362, -0.9999695
          %v371 = vmax.f32 %v363, -0.9999695
          %v372 = vmax.f32 %v364, -0.9999695
          %v373 = vmax.f32 %v365, -0.9999695
          %v374 = vmax.f32 %v366, -0.9999695
          %v375 = vmin.f32 %v367, 0.9999695
          %v376 = vmin.f32 %v368, 0.9999695
          %v377 = vmin.f32 %v369, 0.9999695
          %v378 = vmin.f32 %v370, 0.9999695
          %v379 = vmin.f32 %v371, 0.9999695
          %v380 = vmin.f32 %v372, 0.9999695
          %v381 = vmin.f32 %v373, 0.9999695
          %v382 = vmin.f32 %v374, 0.9999695
          %v383 = vmul.f32 %v375, 32768.0
          %v384 = vmul.f32 %v376, 32768.0
          %v385 = vmul.f32 %v377, 32768.0
          %v386 = vmul.f32 %v378, 32768.0
          %v387 = vmul.f32 %v379, 32768.0
          %v388 = vmul.f32 %v380, 32768.0
          %v389 = vmul.f32 %v381, 32768.0
          %v390 = vmul.f32 %v382, 32768.0
          %vm391 = vcmp.lt.f32.partialorder %v383, 0.0
          %vm392 = vcmp.lt.f32.partialorder %v384, 0.0
          %vm393 = vcmp.lt.f32.partialorder %v385, 0.0
          %vm394 = vcmp.lt.f32.partialorder %v386, 0.0
          %vm395 = vcmp.lt.f32.partialorder %v387, 0.0
          %vm396 = vcmp.lt.f32.partialorder %v388, 0.0
          %vm397 = vcmp.lt.f32.partialorder %v389, 0.0
          %vm398 = vcmp.lt.f32.partialorder %v390, 0.0
          %v399 = vceil.f32 %v383
          %v400 = vceil.f32 %v384
          %v401 = vceil.f32 %v385
          %v402 = vceil.f32 %v386
          %v403 = vceil.f32 %v387
          %v404 = vceil.f32 %v388
          %v405 = vceil.f32 %v389
          %v406 = vceil.f32 %v390
          %v407 = vfloor.f32 %v383
          %v408 = vfloor.f32 %v384
          %v409 = vfloor.f32 %v385
          %v410 = vfloor.f32 %v386
          %v411 = vfloor.f32 %v387
          %v412 = vfloor.f32 %v388
          %v413 = vfloor.f32 %v389
          %v414 = vfloor.f32 %v390
          %v415 = vsel %vm391, %v399, %v407
          %v416 = vsel %vm392, %v400, %v408
          %v417 = vsel %vm393, %v401, %v409
          %v418 = vsel %vm394, %v402, %v410
          %v419 = vsel %vm395, %v403, %v411
          %v420 = vsel %vm396, %v404, %v412
          %v421 = vsel %vm397, %v405, %v413
          %v422 = vsel %vm398, %v406, %v414
          %v423 = vmul.f32 %v415, -3.0517578e-05
          %v424 = vmul.f32 %v416, -3.0517578e-05
          %v425 = vmul.f32 %v417, -3.0517578e-05
          %v426 = vmul.f32 %v418, -3.0517578e-05
          %v427 = vmul.f32 %v419, -3.0517578e-05
          %v428 = vmul.f32 %v420, -3.0517578e-05
          %v429 = vmul.f32 %v421, -3.0517578e-05
          %v430 = vmul.f32 %v422, -3.0517578e-05
          %431 = vst [vmem:[#allocation2] sm:$0xff] %v423
          %432 = vst [vmem:[#allocation2 + $0x8] sm:$0xff] %v424
          %433 = vst [vmem:[#allocation2 + $0x10] sm:$0xff] %v425
          %434 = vst [vmem:[#allocation2 + $0x18] sm:$0xff] %v426
          %435 = vst [vmem:[#allocation2 + $0x20] sm:$0xff] %v427
          %436 = vst [vmem:[#allocation2 + $0x28] sm:$0xff] %v428
          %437 = vst [vmem:[#allocation2 + $0x30] sm:$0xff] %v429
          %438 = vst [vmem:[#allocation2 + $0x38] sm:$0xff] %v430
          %439 = vst [vmem:[#allocation3] sm:$0xff] 0.0
          %440 = vst [vmem:[#allocation3 + $0x8] sm:$0xff] 0.0
          %441 = vst [vmem:[#allocation3 + $0x10] sm:$0xff] 0.0
          %442 = vst [vmem:[#allocation3 + $0x18] sm:$0xff] 0.0
          %443 = vst [vmem:[#allocation3 + $0x20] sm:$0xff] 0.0
          %444 = vst [vmem:[#allocation3 + $0x28] sm:$0xff] 0.0
          %445 = vst [vmem:[#allocation3 + $0x30] sm:$0xff] 0.0
          %446 = vst [vmem:[#allocation3 + $0x38] sm:$0xff] 0.0
        $region56: #{tpu_custom_call.1} parent=39 // pred_fallthru
          _
        %v447 = vld [vmem:[#allocation2] sm:$0xff]
        %v448 = vld [vmem:[#allocation2 + $0x8] sm:$0xff]
        %v449 = vld [vmem:[#allocation2 + $0x10] sm:$0xff]
        %v450 = vld [vmem:[#allocation2 + $0x18] sm:$0xff]
        %v451 = vld [vmem:[#allocation2 + $0x20] sm:$0xff]
        %v452 = vld [vmem:[#allocation2 + $0x28] sm:$0xff]
        %v453 = vld [vmem:[#allocation2 + $0x30] sm:$0xff]
        %v454 = vld [vmem:[#allocation2 + $0x38] sm:$0xff]
        %v455 = vld [vmem:[%s296] sm:$0xff]
        %v456 = vld [vmem:[%s296 + $0x8] sm:$0xff]
        %v457 = vld [vmem:[%s296 + $0x10] sm:$0xff]
        %v458 = vld [vmem:[%s296 + $0x18] sm:$0xff]
        %v459 = vld [vmem:[%s296 + $0x20] sm:$0xff]
        %v460 = vld [vmem:[%s296 + $0x28] sm:$0xff]
        %v461 = vld [vmem:[%s296 + $0x30] sm:$0xff]
        %v462 = vld [vmem:[%s296 + $0x38] sm:$0xff]
        %v463 = vld [vmem:[%s296 + $0x40] sm:$0xff]
        %v464 = vld [vmem:[%s296 + $0x48] sm:$0xff]
        %v465 = vld [vmem:[%s296 + $0x50] sm:$0xff]
        %v466 = vld [vmem:[%s296 + $0x58] sm:$0xff]
        %v467 = vld [vmem:[%s296 + $0x60] sm:$0xff]
        %v468 = vld [vmem:[%s296 + $0x68] sm:$0xff]
        %v469 = vld [vmem:[%s296 + $0x70] sm:$0xff]
        %v470 = vld [vmem:[%s296 + $0x78] sm:$0xff]
        %v471 = vld [vmem:[%s296 + $0x80] sm:$0xff]
        %v472 = vld [vmem:[%s296 + $0x88] sm:$0xff]
        %v473 = vld [vmem:[%s296 + $0x90] sm:$0xff]
        %v474 = vld [vmem:[%s296 + $0x98] sm:$0xff]
        %v475 = vld [vmem:[%s296 + $0xa0] sm:$0xff]
        %v476 = vld [vmem:[%s296 + $0xa8] sm:$0xff]
        %v477 = vld [vmem:[%s296 + $0xb0] sm:$0xff]
        %v478 = vld [vmem:[%s296 + $0xb8] sm:$0xff]
        %v479 = vld [vmem:[%s296 + $0xc0] sm:$0xff]
        %v480 = vld [vmem:[%s296 + $0xc8] sm:$0xff]
        %v481 = vld [vmem:[%s296 + $0xd0] sm:$0xff]
        %v482 = vld [vmem:[%s296 + $0xd8] sm:$0xff]
        %v483 = vld [vmem:[%s296 + $0xe0] sm:$0xff]
        %v484 = vld [vmem:[%s296 + $0xe8] sm:$0xff]
        %v485 = vld [vmem:[%s296 + $0xf0] sm:$0xff]
        %v486 = vld [vmem:[%s296 + $0xf8] sm:$0xff]
        %v487 = vld [vmem:[%s351] sm:$0x3]
        %v489 = vlaneseq
        %v490 = vshrl.u32 %v489, 7
        %v491 = vsub.s32 0, %v490
        %v492 = vrot.slane %v487, %v491
        %v493 = vlaneseq
        %v494 = vshrl.u32 %v493, 7
        %v495 = vsub.s32 1, %v494
        %v496 = vrot.slane %v487, %v495
        %499 = vmatprep.subr.mxu0 %v456
        %500 = vmatpush1.msra.mxu0 %v455
        %501 = vmatprep.subr.mxu0 %v458
        %502 = vmatpush1.msra.mxu0 %v457
        %503 = vmatprep.subr.mxu0 %v460
        %504 = vmatpush1.msra.mxu0 %v459
        %505 = vmatprep.subr.mxu0 %v462
        %506 = vmatpush1.msra.mxu0 %v461
        %507 = vmatprep.subr.mxu0 %v464
        %508 = vmatpush1.msra.mxu0 %v463
        %509 = vmatprep.subr.mxu0 %v466
        %510 = vmatpush1.msra.mxu0 %v465
        %511 = vmatprep.subr.mxu0 %v468
        %512 = vmatpush1.msra.mxu0 %v467
        %513 = vmatprep.subr.mxu0 %v470
        %514 = vmatpush1.msra.mxu0 %v469
        %515 = vmatprep.subr.mxu0 %v472
        %516 = vmatpush1.msra.mxu0 %v471
        %517 = vmatprep.subr.mxu0 %v474
        %518 = vmatpush1.msra.mxu0 %v473
        %519 = vmatprep.subr.mxu0 %v476
        %520 = vmatpush1.msra.mxu0 %v475
        %521 = vmatprep.subr.mxu0 %v478
        %522 = vmatpush1.msra.mxu0 %v477
        %523 = vmatprep.subr.mxu0 %v480
        %524 = vmatpush1.msra.mxu0 %v479
        %525 = vmatprep.subr.mxu0 %v482
        %526 = vmatpush1.msra.mxu0 %v481
        %527 = vmatprep.subr.mxu0 %v484
        %528 = vmatpush1.msra.mxu0 %v483
        %529 = vmatprep.subr.mxu0 %v486
        %530 = vmatpush1.msra.mxu0 %v485
        %531 = vmatprep.subr.mxu0 0.0
        %532 = vmatpush1.msra.mxu0 0.0
        %533 = vmatprep.subr.mxu0 0.0
        %534 = vmatpush1.msra.mxu0 0.0
        %535 = vmatprep.subr.mxu0 0.0
        %536 = vmatpush1.msra.mxu0 0.0
        %537 = vmatprep.subr.mxu0 0.0
        %538 = vmatpush1.msra.mxu0 0.0
        %539 = vmatprep.subr.mxu0 0.0
        %540 = vmatpush1.msra.mxu0 0.0
        %541 = vmatprep.subr.mxu0 0.0
        %542 = vmatpush1.msra.mxu0 0.0
        %543 = vmatprep.subr.mxu0 0.0
        %544 = vmatpush1.msra.mxu0 0.0
        %545 = vmatprep.subr.mxu0 0.0
        %546 = vmatpush1.msra.mxu0 0.0
        %547 = vmatprep.subr.mxu0 0.0
        %548 = vmatpush1.msra.mxu0 0.0
        %549 = vmatprep.subr.mxu0 0.0
        %550 = vmatpush1.msra.mxu0 0.0
        %551 = vmatprep.subr.mxu0 0.0
        %552 = vmatpush1.msra.mxu0 0.0
        %553 = vmatprep.subr.mxu0 0.0
        %554 = vmatpush1.msra.mxu0 0.0
        %555 = vmatprep.subr.mxu0 0.0
        %556 = vmatpush1.msra.mxu0 0.0
        %557 = vmatprep.subr.mxu0 0.0
        %558 = vmatpush1.msra.mxu0 0.0
        %559 = vmatprep.subr.mxu0 0.0
        %560 = vmatpush1.msra.mxu0 0.0
        %561 = vmatprep.subr.mxu0 0.0
        %562 = vmatpush1.msra.mxu0 0.0
        %563 = vmatprep.mubr.f32.mxu0 0.0
        %564 = vmatmul.mubr.f32.gmra.mrb[0].mxu0 %v447
        %v565 = vpop.f32.mrb[0].mxu0
        %v566 = vadd.f32 %v492, %v565
        %v567 = vpop.f32.mrb[0].mxu0
        %v568 = vadd.f32 %v496, %v567
        %569 = vmatprep.mubr.f32.mxu0 0.0
        %570 = vmatmul.mubr.f32.gmra.mrb[0].mxu0 %v448
        %v571 = vpop.f32.mrb[0].mxu0
        %v572 = vadd.f32 %v492, %v571
        %v573 = vpop.f32.mrb[0].mxu0
        %v574 = vadd.f32 %v496, %v573
        %575 = vmatprep.mubr.f32.mxu0 0.0
        %576 = vmatmul.mubr.f32.gmra.mrb[0].mxu0 %v449
        %v577 = vpop.f32.mrb[0].mxu0
        %v578 = vadd.f32 %v492, %v577
        %v579 = vpop.f32.mrb[0].mxu0
        %v580 = vadd.f32 %v496, %v579
        %581 = vmatprep.mubr.f32.mxu0 0.0
        %582 = vmatmul.mubr.f32.gmra.mrb[0].mxu0 %v450
        %v583 = vpop.f32.mrb[0].mxu0
        %v584 = vadd.f32 %v492, %v583
        %v585 = vpop.f32.mrb[0].mxu0
        %v586 = vadd.f32 %v496, %v585
        %587 = vmatprep.mubr.f32.mxu0 0.0
        %588 = vmatmul.mubr.f32.gmra.mrb[0].mxu0 %v451
        %v589 = vpop.f32.mrb[0].mxu0
        %v590 = vadd.f32 %v492, %v589
        %v591 = vpop.f32.mrb[0].mxu0
        %v592 = vadd.f32 %v496, %v591
        %593 = vmatprep.mubr.f32.mxu0 0.0
        %594 = vmatmul.mubr.f32.gmra.mrb[0].mxu0 %v452
        %v595 = vpop.f32.mrb[0].mxu0
        %v596 = vadd.f32 %v492, %v595
        %v597 = vpop.f32.mrb[0].mxu0
        %v598 = vadd.f32 %v496, %v597
        %599 = vmatprep.mubr.f32.mxu0 0.0
        %600 = vmatmul.mubr.f32.gmra.mrb[0].mxu0 %v453
        %v601 = vpop.f32.mrb[0].mxu0
        %v602 = vadd.f32 %v492, %v601
        %v603 = vpop.f32.mrb[0].mxu0
        %v604 = vadd.f32 %v496, %v603
        %605 = vmatprep.mubr.f32.mxu0 0.0
        %606 = vmatmul.mubr.f32.gmra.mrb[0].mxu0 %v454
        %v607 = vpop.f32.mrb[0].mxu0
        %v608 = vadd.f32 %v492, %v607
        %v609 = vpop.f32.mrb[0].mxu0
        %v610 = vadd.f32 %v496, %v609
        %611 = vdwg.mxu0
        %v612 = vmax.f32 %v566, -0.9999695
        %v613 = vmax.f32 %v568, -0.9999695
        %v614 = vmax.f32 %v572, -0.9999695
        %v615 = vmax.f32 %v574, -0.9999695
        %v616 = vmax.f32 %v578, -0.9999695
        %v617 = vmax.f32 %v580, -0.9999695
        %v618 = vmax.f32 %v584, -0.9999695
        %v619 = vmax.f32 %v586, -0.9999695
        %v620 = vmax.f32 %v590, -0.9999695
        %v621 = vmax.f32 %v592, -0.9999695
        %v622 = vmax.f32 %v596, -0.9999695
        %v623 = vmax.f32 %v598, -0.9999695
        %v624 = vmax.f32 %v602, -0.9999695
        %v625 = vmax.f32 %v604, -0.9999695
        %v626 = vmax.f32 %v608, -0.9999695
        %v627 = vmax.f32 %v610, -0.9999695
        %v628 = vmin.f32 %v612, 0.9999695
        %v629 = vmin.f32 %v613, 0.9999695
        %v630 = vmin.f32 %v614, 0.9999695
        %v631 = vmin.f32 %v615, 0.9999695
        %v632 = vmin.f32 %v616, 0.9999695
        %v633 = vmin.f32 %v617, 0.9999695
        %v634 = vmin.f32 %v618, 0.9999695
        %v635 = vmin.f32 %v619, 0.9999695
        %v636 = vmin.f32 %v620, 0.9999695
        %v637 = vmin.f32 %v621, 0.9999695
        %v638 = vmin.f32 %v622, 0.9999695
        %v639 = vmin.f32 %v623, 0.9999695
        %v640 = vmin.f32 %v624, 0.9999695
        %v641 = vmin.f32 %v625, 0.9999695
        %v642 = vmin.f32 %v626, 0.9999695
        %v643 = vmin.f32 %v627, 0.9999695
        %v644 = vmul.f32 %v628, 32768.0
        %v645 = vmul.f32 %v629, 32768.0
        %v646 = vmul.f32 %v630, 32768.0
        %v647 = vmul.f32 %v631, 32768.0
        %v648 = vmul.f32 %v632, 32768.0
        %v649 = vmul.f32 %v633, 32768.0
        %v650 = vmul.f32 %v634, 32768.0
        %v651 = vmul.f32 %v635, 32768.0
        %v652 = vmul.f32 %v636, 32768.0
        %v653 = vmul.f32 %v637, 32768.0
        %v654 = vmul.f32 %v638, 32768.0
        %v655 = vmul.f32 %v639, 32768.0
        %v656 = vmul.f32 %v640, 32768.0
        %v657 = vmul.f32 %v641, 32768.0
        %v658 = vmul.f32 %v642, 32768.0
        %v659 = vmul.f32 %v643, 32768.0
        %vm660 = vcmp.lt.f32.partialorder %v644, 0.0
        %vm661 = vcmp.lt.f32.partialorder %v645, 0.0
        %vm662 = vcmp.lt.f32.partialorder %v646, 0.0
        %vm663 = vcmp.lt.f32.partialorder %v647, 0.0
        %vm664 = vcmp.lt.f32.partialorder %v648, 0.0
        %vm665 = vcmp.lt.f32.partialorder %v649, 0.0
        %vm666 = vcmp.lt.f32.partialorder %v650, 0.0
        %vm667 = vcmp.lt.f32.partialorder %v651, 0.0
        %vm668 = vcmp.lt.f32.partialorder %v652, 0.0
        %vm669 = vcmp.lt.f32.partialorder %v653, 0.0
        %vm670 = vcmp.lt.f32.partialorder %v654, 0.0
        %vm671 = vcmp.lt.f32.partialorder %v655, 0.0
        %vm672 = vcmp.lt.f32.partialorder %v656, 0.0
        %vm673 = vcmp.lt.f32.partialorder %v657, 0.0
        %vm674 = vcmp.lt.f32.partialorder %v658, 0.0
        %vm675 = vcmp.lt.f32.partialorder %v659, 0.0
        %v676 = vceil.f32 %v644
        %v677 = vceil.f32 %v645
        %v678 = vceil.f32 %v646
        %v679 = vceil.f32 %v647
        %v680 = vceil.f32 %v648
        %v681 = vceil.f32 %v649
        %v682 = vceil.f32 %v650
        %v683 = vceil.f32 %v651
        %v684 = vceil.f32 %v652
        %v685 = vceil.f32 %v653
        %v686 = vceil.f32 %v654
        %v687 = vceil.f32 %v655
        %v688 = vceil.f32 %v656
        %v689 = vceil.f32 %v657
        %v690 = vceil.f32 %v658
        %v691 = vceil.f32 %v659
        %v692 = vfloor.f32 %v644
        %v693 = vfloor.f32 %v645
        %v694 = vfloor.f32 %v646
        %v695 = vfloor.f32 %v647
        %v696 = vfloor.f32 %v648
        %v697 = vfloor.f32 %v649
        %v698 = vfloor.f32 %v650
        %v699 = vfloor.f32 %v651
        %v700 = vfloor.f32 %v652
        %v701 = vfloor.f32 %v653
        %v702 = vfloor.f32 %v654
        %v703 = vfloor.f32 %v655
        %v704 = vfloor.f32 %v656
        %v705 = vfloor.f32 %v657
        %v706 = vfloor.f32 %v658
        %v707 = vfloor.f32 %v659
        %v708 = vsel %vm660, %v676, %v692
        %v709 = vsel %vm661, %v677, %v693
        %v710 = vsel %vm662, %v678, %v694
        %v711 = vsel %vm663, %v679, %v695
        %v712 = vsel %vm664, %v680, %v696
        %v713 = vsel %vm665, %v681, %v697
        %v714 = vsel %vm666, %v682, %v698
        %v715 = vsel %vm667, %v683, %v699
        %v716 = vsel %vm668, %v684, %v700
        %v717 = vsel %vm669, %v685, %v701
        %v718 = vsel %vm670, %v686, %v702
        %v719 = vsel %vm671, %v687, %v703
        %v720 = vsel %vm672, %v688, %v704
        %v721 = vsel %vm673, %v689, %v705
        %v722 = vsel %vm674, %v690, %v706
        %v723 = vsel %vm675, %v691, %v707
        %v724 = vmul.f32 %v708, -3.0517578e-05
        %v725 = vmul.f32 %v709, -3.0517578e-05
        %v726 = vmul.f32 %v710, -3.0517578e-05
        %v727 = vmul.f32 %v711, -3.0517578e-05
        %v728 = vmul.f32 %v712, -3.0517578e-05
        %v729 = vmul.f32 %v713, -3.0517578e-05
        %v730 = vmul.f32 %v714, -3.0517578e-05
        %v731 = vmul.f32 %v715, -3.0517578e-05
        %v732 = vmul.f32 %v716, -3.0517578e-05
        %v733 = vmul.f32 %v717, -3.0517578e-05
        %v734 = vmul.f32 %v718, -3.0517578e-05
        %v735 = vmul.f32 %v719, -3.0517578e-05
        %v736 = vmul.f32 %v720, -3.0517578e-05
        %v737 = vmul.f32 %v721, -3.0517578e-05
        %v738 = vmul.f32 %v722, -3.0517578e-05
        %v739 = vmul.f32 %v723, -3.0517578e-05
        %v740 = vxor.u32 %v724, 2147483648
        %v741 = vxor.u32 %v725, 2147483648
        %v742 = vxor.u32 %v726, 2147483648
        %v743 = vxor.u32 %v727, 2147483648
        %v744 = vxor.u32 %v728, 2147483648
        %v745 = vxor.u32 %v729, 2147483648
        %v746 = vxor.u32 %v730, 2147483648
        %v747 = vxor.u32 %v731, 2147483648
        %v748 = vxor.u32 %v732, 2147483648
        %v749 = vxor.u32 %v733, 2147483648
        %v750 = vxor.u32 %v734, 2147483648
        %v751 = vxor.u32 %v735, 2147483648
        %v752 = vxor.u32 %v736, 2147483648
        %v753 = vxor.u32 %v737, 2147483648
        %v754 = vxor.u32 %v738, 2147483648
        %v755 = vxor.u32 %v739, 2147483648
        %v756 = vmul.f32 %v740, 1.442695
        %v757 = vpow.pop %v756
        %v758 = vmul.f32 %v741, 1.442695
        %v759 = vpow.pop %v758
        %v760 = vmul.f32 %v742, 1.442695
        %v761 = vpow.pop %v760
        %v762 = vmul.f32 %v743, 1.442695
        %v763 = vpow.pop %v762
        %v764 = vmul.f32 %v744, 1.442695
        %v765 = vpow.pop %v764
        %v766 = vmul.f32 %v745, 1.442695
        %v767 = vpow.pop %v766
        %v768 = vmul.f32 %v746, 1.442695
        %v769 = vpow.pop %v768
        %v770 = vmul.f32 %v747, 1.442695
        %v771 = vpow.pop %v770
        %v772 = vmul.f32 %v748, 1.442695
        %v773 = vpow.pop %v772
        %v774 = vmul.f32 %v749, 1.442695
        %v775 = vpow.pop %v774
        %v776 = vmul.f32 %v750, 1.442695
        %v777 = vpow.pop %v776
        %v778 = vmul.f32 %v751, 1.442695
        %v779 = vpow.pop %v778
        %v780 = vmul.f32 %v752, 1.442695
        %v781 = vpow.pop %v780
        %v782 = vmul.f32 %v753, 1.442695
        %v783 = vpow.pop %v782
        %v784 = vmul.f32 %v754, 1.442695
        %v785 = vpow.pop %v784
        %v786 = vmul.f32 %v755, 1.442695
        %v787 = vpow.pop %v786
        %v788 = vadd.f32 %v757, 1.0
        %v789 = vadd.f32 %v759, 1.0
        %v790 = vadd.f32 %v761, 1.0
        %v791 = vadd.f32 %v763, 1.0
        %v792 = vadd.f32 %v765, 1.0
        %v793 = vadd.f32 %v767, 1.0
        %v794 = vadd.f32 %v769, 1.0
        %v795 = vadd.f32 %v771, 1.0
        %v796 = vadd.f32 %v773, 1.0
        %v797 = vadd.f32 %v775, 1.0
        %v798 = vadd.f32 %v777, 1.0
        %v799 = vadd.f32 %v779, 1.0
        %v800 = vadd.f32 %v781, 1.0
        %v801 = vadd.f32 %v783, 1.0
        %v802 = vadd.f32 %v785, 1.0
        %v803 = vadd.f32 %v787, 1.0
        %v804 = vrcp.pop %v788
        %v805 = vmul.f32 1.0, %v804
        %v806 = vrcp.pop %v789
        %v807 = vmul.f32 1.0, %v806
        %v808 = vrcp.pop %v790
        %v809 = vmul.f32 1.0, %v808
        %v810 = vrcp.pop %v791
        %v811 = vmul.f32 1.0, %v810
        %v812 = vrcp.pop %v792
        %v813 = vmul.f32 1.0, %v812
        %v814 = vrcp.pop %v793
        %v815 = vmul.f32 1.0, %v814
        %v816 = vrcp.pop %v794
        %v817 = vmul.f32 1.0, %v816
        %v818 = vrcp.pop %v795
        %v819 = vmul.f32 1.0, %v818
        %v820 = vrcp.pop %v796
        %v821 = vmul.f32 1.0, %v820
        %v822 = vrcp.pop %v797
        %v823 = vmul.f32 1.0, %v822
        %v824 = vrcp.pop %v798
        %v825 = vmul.f32 1.0, %v824
        %v826 = vrcp.pop %v799
        %v827 = vmul.f32 1.0, %v826
        %v828 = vrcp.pop %v800
        %v829 = vmul.f32 1.0, %v828
        %v830 = vrcp.pop %v801
        %v831 = vmul.f32 1.0, %v830
        %v832 = vrcp.pop %v802
        %v833 = vmul.f32 1.0, %v832
        %v834 = vrcp.pop %v803
        %v835 = vmul.f32 1.0, %v834
        %v836 = vmul.f32 %v724, %v805
        %v837 = vmul.f32 %v725, %v807
        %v838 = vmul.f32 %v726, %v809
        %v839 = vmul.f32 %v727, %v811
        %v840 = vmul.f32 %v728, %v813
        %v841 = vmul.f32 %v729, %v815
        %v842 = vmul.f32 %v730, %v817
        %v843 = vmul.f32 %v731, %v819
        %v844 = vmul.f32 %v732, %v821
        %v845 = vmul.f32 %v733, %v823
        %v846 = vmul.f32 %v734, %v825
        %v847 = vmul.f32 %v735, %v827
        %v848 = vmul.f32 %v736, %v829
        %v849 = vmul.f32 %v737, %v831
        %v850 = vmul.f32 %v738, %v833
        %v851 = vmul.f32 %v739, %v835
        %v852 = vmax.f32 %v836, -0.9999695
        %v853 = vmax.f32 %v837, -0.9999695
        %v854 = vmax.f32 %v838, -0.9999695
        %v855 = vmax.f32 %v839, -0.9999695
        %v856 = vmax.f32 %v840, -0.9999695
        %v857 = vmax.f32 %v841, -0.9999695
        %v858 = vmax.f32 %v842, -0.9999695
        %v859 = vmax.f32 %v843, -0.9999695
        %v860 = vmax.f32 %v844, -0.9999695
        %v861 = vmax.f32 %v845, -0.9999695
        %v862 = vmax.f32 %v846, -0.9999695
        %v863 = vmax.f32 %v847, -0.9999695
        %v864 = vmax.f32 %v848, -0.9999695
        %v865 = vmax.f32 %v849, -0.9999695
        %v866 = vmax.f32 %v850, -0.9999695
        %v867 = vmax.f32 %v851, -0.9999695
        %v868 = vmin.f32 %v852, 0.9999695
        %v869 = vmin.f32 %v853, 0.9999695
        %v870 = vmin.f32 %v854, 0.9999695
        %v871 = vmin.f32 %v855, 0.9999695
        %v872 = vmin.f32 %v856, 0.9999695
        %v873 = vmin.f32 %v857, 0.9999695
        %v874 = vmin.f32 %v858, 0.9999695
        %v875 = vmin.f32 %v859, 0.9999695
        %v876 = vmin.f32 %v860, 0.9999695
        %v877 = vmin.f32 %v861, 0.9999695
        %v878 = vmin.f32 %v862, 0.9999695
        %v879 = vmin.f32 %v863, 0.9999695
        %v880 = vmin.f32 %v864, 0.9999695
        %v881 = vmin.f32 %v865, 0.9999695
        %v882 = vmin.f32 %v866, 0.9999695
        %v883 = vmin.f32 %v867, 0.9999695
        %v884 = vmul.f32 %v868, 32768.0
        %v885 = vmul.f32 %v869, 32768.0
        %v886 = vmul.f32 %v870, 32768.0
        %v887 = vmul.f32 %v871, 32768.0
        %v888 = vmul.f32 %v872, 32768.0
        %v889 = vmul.f32 %v873, 32768.0
        %v890 = vmul.f32 %v874, 32768.0
        %v891 = vmul.f32 %v875, 32768.0
        %v892 = vmul.f32 %v876, 32768.0
        %v893 = vmul.f32 %v877, 32768.0
        %v894 = vmul.f32 %v878, 32768.0
        %v895 = vmul.f32 %v879, 32768.0
        %v896 = vmul.f32 %v880, 32768.0
        %v897 = vmul.f32 %v881, 32768.0
        %v898 = vmul.f32 %v882, 32768.0
        %v899 = vmul.f32 %v883, 32768.0
        %vm900 = vcmp.lt.f32.partialorder %v884, 0.0
        %vm901 = vcmp.lt.f32.partialorder %v885, 0.0
        %vm902 = vcmp.lt.f32.partialorder %v886, 0.0
        %vm903 = vcmp.lt.f32.partialorder %v887, 0.0
        %vm904 = vcmp.lt.f32.partialorder %v888, 0.0
        %vm905 = vcmp.lt.f32.partialorder %v889, 0.0
        %vm906 = vcmp.lt.f32.partialorder %v890, 0.0
        %vm907 = vcmp.lt.f32.partialorder %v891, 0.0
        %vm908 = vcmp.lt.f32.partialorder %v892, 0.0
        %vm909 = vcmp.lt.f32.partialorder %v893, 0.0
        %vm910 = vcmp.lt.f32.partialorder %v894, 0.0
        %vm911 = vcmp.lt.f32.partialorder %v895, 0.0
        %vm912 = vcmp.lt.f32.partialorder %v896, 0.0
        %vm913 = vcmp.lt.f32.partialorder %v897, 0.0
        %vm914 = vcmp.lt.f32.partialorder %v898, 0.0
        %vm915 = vcmp.lt.f32.partialorder %v899, 0.0
        %v916 = vceil.f32 %v884
        %v917 = vceil.f32 %v885
        %v918 = vceil.f32 %v886
        %v919 = vceil.f32 %v887
        %v920 = vceil.f32 %v888
        %v921 = vceil.f32 %v889
        %v922 = vceil.f32 %v890
        %v923 = vceil.f32 %v891
        %v924 = vceil.f32 %v892
        %v925 = vceil.f32 %v893
        %v926 = vceil.f32 %v894
        %v927 = vceil.f32 %v895
        %v928 = vceil.f32 %v896
        %v929 = vceil.f32 %v897
        %v930 = vceil.f32 %v898
        %v931 = vceil.f32 %v899
        %v932 = vfloor.f32 %v884
        %v933 = vfloor.f32 %v885
        %v934 = vfloor.f32 %v886
        %v935 = vfloor.f32 %v887
        %v936 = vfloor.f32 %v888
        %v937 = vfloor.f32 %v889
        %v938 = vfloor.f32 %v890
        %v939 = vfloor.f32 %v891
        %v940 = vfloor.f32 %v892
        %v941 = vfloor.f32 %v893
        %v942 = vfloor.f32 %v894
        %v943 = vfloor.f32 %v895
        %v944 = vfloor.f32 %v896
        %v945 = vfloor.f32 %v897
        %v946 = vfloor.f32 %v898
        %v947 = vfloor.f32 %v899
        %v948 = vsel %vm900, %v916, %v932
        %v949 = vsel %vm901, %v917, %v933
        %v950 = vsel %vm902, %v918, %v934
        %v951 = vsel %vm903, %v919, %v935
        %v952 = vsel %vm904, %v920, %v936
        %v953 = vsel %vm905, %v921, %v937
        %v954 = vsel %vm906, %v922, %v938
        %v955 = vsel %vm907, %v923, %v939
        %v956 = vsel %vm908, %v924, %v940
        %v957 = vsel %vm909, %v925, %v941
        %v958 = vsel %vm910, %v926, %v942
        %v959 = vsel %vm911, %v927, %v943
        %v960 = vsel %vm912, %v928, %v944
        %v961 = vsel %vm913, %v929, %v945
        %v962 = vsel %vm914, %v930, %v946
        %v963 = vsel %vm915, %v931, %v947
        %v964 = vmul.f32 %v948, -3.0517578e-05
        %v965 = vmul.f32 %v949, -3.0517578e-05
        %v966 = vmul.f32 %v950, -3.0517578e-05
        %v967 = vmul.f32 %v951, -3.0517578e-05
        %v968 = vmul.f32 %v952, -3.0517578e-05
        %v969 = vmul.f32 %v953, -3.0517578e-05
        %v970 = vmul.f32 %v954, -3.0517578e-05
        %v971 = vmul.f32 %v955, -3.0517578e-05
        %v972 = vmul.f32 %v956, -3.0517578e-05
        %v973 = vmul.f32 %v957, -3.0517578e-05
        %v974 = vmul.f32 %v958, -3.0517578e-05
        %v975 = vmul.f32 %v959, -3.0517578e-05
        %v976 = vmul.f32 %v960, -3.0517578e-05
        %v977 = vmul.f32 %v961, -3.0517578e-05
        %v978 = vmul.f32 %v962, -3.0517578e-05
        %v979 = vmul.f32 %v963, -3.0517578e-05
        %v980 = vld [vmem:[#allocation3] sm:$0xff]
        %v981 = vld [vmem:[#allocation3 + $0x8] sm:$0xff]
        %v982 = vld [vmem:[#allocation3 + $0x10] sm:$0xff]
        %v983 = vld [vmem:[#allocation3 + $0x18] sm:$0xff]
        %v984 = vld [vmem:[#allocation3 + $0x20] sm:$0xff]
        %v985 = vld [vmem:[#allocation3 + $0x28] sm:$0xff]
        %v986 = vld [vmem:[#allocation3 + $0x30] sm:$0xff]
        %v987 = vld [vmem:[#allocation3 + $0x38] sm:$0xff]
        %v988 = vld [vmem:[%s305] sm:$0xff]
        %v989 = vld [vmem:[%s305 + $0x8] sm:$0xff]
        %v990 = vld [vmem:[%s305 + $0x10] sm:$0xff]
        %v991 = vld [vmem:[%s305 + $0x18] sm:$0xff]
        %v992 = vld [vmem:[%s305 + $0x20] sm:$0xff]
        %v993 = vld [vmem:[%s305 + $0x28] sm:$0xff]
        %v994 = vld [vmem:[%s305 + $0x30] sm:$0xff]
        %v995 = vld [vmem:[%s305 + $0x38] sm:$0xff]
        %v996 = vld [vmem:[%s305 + $0x40] sm:$0xff]
        %v997 = vld [vmem:[%s305 + $0x48] sm:$0xff]
        %v998 = vld [vmem:[%s305 + $0x50] sm:$0xff]
        %v999 = vld [vmem:[%s305 + $0x58] sm:$0xff]
        %v1000 = vld [vmem:[%s305 + $0x60] sm:$0xff]
        %v1001 = vld [vmem:[%s305 + $0x68] sm:$0xff]
        %v1002 = vld [vmem:[%s305 + $0x70] sm:$0xff]
        %v1003 = vld [vmem:[%s305 + $0x78] sm:$0xff]
        %v1004 = vld [vmem:[%s305 + $0x80] sm:$0xff]
        %v1005 = vld [vmem:[%s305 + $0x88] sm:$0xff]
        %v1006 = vld [vmem:[%s305 + $0x90] sm:$0xff]
        %v1007 = vld [vmem:[%s305 + $0x98] sm:$0xff]
        %v1008 = vld [vmem:[%s305 + $0xa0] sm:$0xff]
        %v1009 = vld [vmem:[%s305 + $0xa8] sm:$0xff]
        %v1010 = vld [vmem:[%s305 + $0xb0] sm:$0xff]
        %v1011 = vld [vmem:[%s305 + $0xb8] sm:$0xff]
        %v1012 = vld [vmem:[%s305 + $0xc0] sm:$0xff]
        %v1013 = vld [vmem:[%s305 + $0xc8] sm:$0xff]
        %v1014 = vld [vmem:[%s305 + $0xd0] sm:$0xff]
        %v1015 = vld [vmem:[%s305 + $0xd8] sm:$0xff]
        %v1016 = vld [vmem:[%s305 + $0xe0] sm:$0xff]
        %v1017 = vld [vmem:[%s305 + $0xe8] sm:$0xff]
        %v1018 = vld [vmem:[%s305 + $0xf0] sm:$0xff]
        %v1019 = vld [vmem:[%s305 + $0xf8] sm:$0xff]
        %1020 = vmatprep.subr.mxu0 0.0
        %1021 = vmatpush1.msra.mxu0 %v988
        %1022 = vmatprep.subr.mxu0 0.0
        %1023 = vmatpush1.msra.mxu0 %v989
        %1024 = vmatprep.subr.mxu0 0.0
        %1025 = vmatpush1.msra.mxu0 %v990
        %1026 = vmatprep.subr.mxu0 0.0
        %1027 = vmatpush1.msra.mxu0 %v991
        %1028 = vmatprep.subr.mxu0 0.0
        %1029 = vmatpush1.msra.mxu0 %v992
        %1030 = vmatprep.subr.mxu0 0.0
        %1031 = vmatpush1.msra.mxu0 %v993
        %1032 = vmatprep.subr.mxu0 0.0
        %1033 = vmatpush1.msra.mxu0 %v994
        %1034 = vmatprep.subr.mxu0 0.0
        %1035 = vmatpush1.msra.mxu0 %v995
        %1036 = vmatprep.subr.mxu0 0.0
        %1037 = vmatpush1.msra.mxu0 %v996
        %1038 = vmatprep.subr.mxu0 0.0
        %1039 = vmatpush1.msra.mxu0 %v997
        %1040 = vmatprep.subr.mxu0 0.0
        %1041 = vmatpush1.msra.mxu0 %v998
        %1042 = vmatprep.subr.mxu0 0.0
        %1043 = vmatpush1.msra.mxu0 %v999
        %1044 = vmatprep.subr.mxu0 0.0
        %1045 = vmatpush1.msra.mxu0 %v1000
        %1046 = vmatprep.subr.mxu0 0.0
        %1047 = vmatpush1.msra.mxu0 %v1001
        %1048 = vmatprep.subr.mxu0 0.0
        %1049 = vmatpush1.msra.mxu0 %v1002
        %1050 = vmatprep.subr.mxu0 0.0
        %1051 = vmatpush1.msra.mxu0 %v1003
        %1052 = vmatprep.subr.mxu0 0.0
        %1053 = vmatpush1.msra.mxu0 %v1004
        %1054 = vmatprep.subr.mxu0 0.0
        %1055 = vmatpush1.msra.mxu0 %v1005
        %1056 = vmatprep.subr.mxu0 0.0
        %1057 = vmatpush1.msra.mxu0 %v1006
        %1058 = vmatprep.subr.mxu0 0.0
        %1059 = vmatpush1.msra.mxu0 %v1007
        %1060 = vmatprep.subr.mxu0 0.0
        %1061 = vmatpush1.msra.mxu0 %v1008
        %1062 = vmatprep.subr.mxu0 0.0
        %1063 = vmatpush1.msra.mxu0 %v1009
        %1064 = vmatprep.subr.mxu0 0.0
        %1065 = vmatpush1.msra.mxu0 %v1010
        %1066 = vmatprep.subr.mxu0 0.0
        %1067 = vmatpush1.msra.mxu0 %v1011
        %1068 = vmatprep.subr.mxu0 0.0
        %1069 = vmatpush1.msra.mxu0 %v1012
        %1070 = vmatprep.subr.mxu0 0.0
        %1071 = vmatpush1.msra.mxu0 %v1013
        %1072 = vmatprep.subr.mxu0 0.0
        %1073 = vmatpush1.msra.mxu0 %v1014
        %1074 = vmatprep.subr.mxu0 0.0
        %1075 = vmatpush1.msra.mxu0 %v1015
        %1076 = vmatprep.subr.mxu0 0.0
        %1077 = vmatpush1.msra.mxu0 %v1016
        %1078 = vmatprep.subr.mxu0 0.0
        %1079 = vmatpush1.msra.mxu0 %v1017
        %1080 = vmatprep.subr.mxu0 0.0
        %1081 = vmatpush1.msra.mxu0 %v1018
        %1082 = vmatprep.subr.mxu0 0.0
        %1083 = vmatpush1.msra.mxu0 %v1019
        %1084 = vmatprep.mubr.f32.mxu0 %v965
        %1085 = vmatmul.mubr.f32.gmra.mrb[0].mxu0 %v964
        %v1086 = vpop.f32.mrb[0].mxu0
        %v1087 = vadd.f32 0.0, %v1086
        %v1088 = vpop.f32.mrb[0].mxu0
        %1089 = vmatprep.mubr.f32.mxu0 %v967
        %1090 = vmatmul.mubr.f32.gmra.mrb[0].mxu0 %v966
        %v1091 = vpop.f32.mrb[0].mxu0
        %v1092 = vadd.f32 0.0, %v1091
        %v1093 = vpop.f32.mrb[0].mxu0
        %1094 = vmatprep.mubr.f32.mxu0 %v969
        %1095 = vmatmul.mubr.f32.gmra.mrb[0].mxu0 %v968
        %v1096 = vpop.f32.mrb[0].mxu0
        %v1097 = vadd.f32 0.0, %v1096
        %v1098 = vpop.f32.mrb[0].mxu0
        %1099 = vmatprep.mubr.f32.mxu0 %v971
        %1100 = vmatmul.mubr.f32.gmra.mrb[0].mxu0 %v970
        %v1101 = vpop.f32.mrb[0].mxu0
        %v1102 = vadd.f32 0.0, %v1101
        %v1103 = vpop.f32.mrb[0].mxu0
        %1104 = vmatprep.mubr.f32.mxu0 %v973
        %1105 = vmatmul.mubr.f32.gmra.mrb[0].mxu0 %v972
        %v1106 = vpop.f32.mrb[0].mxu0
        %v1107 = vadd.f32 0.0, %v1106
        %v1108 = vpop.f32.mrb[0].mxu0
        %1109 = vmatprep.mubr.f32.mxu0 %v975
        %1110 = vmatmul.mubr.f32.gmra.mrb[0].mxu0 %v974
        %v1111 = vpop.f32.mrb[0].mxu0
        %v1112 = vadd.f32 0.0, %v1111
        %v1113 = vpop.f32.mrb[0].mxu0
        %1114 = vmatprep.mubr.f32.mxu0 %v977
        %1115 = vmatmul.mubr.f32.gmra.mrb[0].mxu0 %v976
        %v1116 = vpop.f32.mrb[0].mxu0
        %v1117 = vadd.f32 0.0, %v1116
        %v1118 = vpop.f32.mrb[0].mxu0
        %1119 = vmatprep.mubr.f32.mxu0 %v979
        %1120 = vmatmul.mubr.f32.gmra.mrb[0].mxu0 %v978
        %v1121 = vpop.f32.mrb[0].mxu0
        %v1122 = vadd.f32 0.0, %v1121
        %v1123 = vpop.f32.mrb[0].mxu0
        %1124 = vdwg.mxu0
        %v1125 = vadd.f32 %v980, %v1087
        %v1126 = vadd.f32 %v981, %v1092
        %v1127 = vadd.f32 %v982, %v1097
        %v1128 = vadd.f32 %v983, %v1102
        %v1129 = vadd.f32 %v984, %v1107
        %v1130 = vadd.f32 %v985, %v1112
        %v1131 = vadd.f32 %v986, %v1117
        %v1132 = vadd.f32 %v987, %v1122
        %1133 = vst [vmem:[#allocation3] sm:$0xff] %v1125
        %1134 = vst [vmem:[#allocation3 + $0x8] sm:$0xff] %v1126
        %1135 = vst [vmem:[#allocation3 + $0x10] sm:$0xff] %v1127
        %1136 = vst [vmem:[#allocation3 + $0x18] sm:$0xff] %v1128
        %1137 = vst [vmem:[#allocation3 + $0x20] sm:$0xff] %v1129
        %1138 = vst [vmem:[#allocation3 + $0x28] sm:$0xff] %v1130
        %1139 = vst [vmem:[#allocation3 + $0x30] sm:$0xff] %v1131
        %1140 = vst [vmem:[#allocation3 + $0x38] sm:$0xff] %v1132
        %p1141 = scmp.eq.s32.totalorder %s30, 1
        // Predicated region
        $region57: #{tpu_custom_call.1} parent=39 // pred_check
          %p1142 = pneg %p1141
        $region58: #{tpu_custom_call.1} parent=39 // pred_check_branch
          %1144 = sbr.rel (%p1142) target = $region60
        $region59: #{tpu_custom_call.1} parent=39 // pred_region
          %v1145 = vld [vmem:[#allocation3] sm:$0xff]
          %v1146 = vld [vmem:[#allocation3 + $0x8] sm:$0xff]
          %v1147 = vld [vmem:[#allocation3 + $0x10] sm:$0xff]
          %v1148 = vld [vmem:[#allocation3 + $0x18] sm:$0xff]
          %v1149 = vld [vmem:[#allocation3 + $0x20] sm:$0xff]
          %v1150 = vld [vmem:[#allocation3 + $0x28] sm:$0xff]
          %v1151 = vld [vmem:[#allocation3 + $0x30] sm:$0xff]
          %v1152 = vld [vmem:[#allocation3 + $0x38] sm:$0xff]
          %v1153 = vld [vmem:[%s4] sm:$0x1]
          %v1155 = vlaneseq
          %v1156 = vshrl.u32 %v1155, 7
          %v1157 = vsub.s32 0, %v1156
          %v1158 = vrot.slane %v1153, %v1157
          %v1160 = vadd.f32 %v1145, %v1158
          %v1161 = vadd.f32 %v1146, %v1158
          %v1162 = vadd.f32 %v1147, %v1158
          %v1163 = vadd.f32 %v1148, %v1158
          %v1164 = vadd.f32 %v1149, %v1158
          %v1165 = vadd.f32 %v1150, %v1158
          %v1166 = vadd.f32 %v1151, %v1158
          %v1167 = vadd.f32 %v1152, %v1158
          %v1168 = vmax.f32 %v1160, -0.9999695
          %v1169 = vmax.f32 %v1161, -0.9999695
          %v1170 = vmax.f32 %v1162, -0.9999695
          %v1171 = vmax.f32 %v1163, -0.9999695
          %v1172 = vmax.f32 %v1164, -0.9999695
          %v1173 = vmax.f32 %v1165, -0.9999695
          %v1174 = vmax.f32 %v1166, -0.9999695
          %v1175 = vmax.f32 %v1167, -0.9999695
          %v1176 = vmin.f32 %v1168, 0.9999695
          %v1177 = vmin.f32 %v1169, 0.9999695
          %v1178 = vmin.f32 %v1170, 0.9999695
          %v1179 = vmin.f32 %v1171, 0.9999695
          %v1180 = vmin.f32 %v1172, 0.9999695
          %v1181 = vmin.f32 %v1173, 0.9999695
          %v1182 = vmin.f32 %v1174, 0.9999695
          %v1183 = vmin.f32 %v1175, 0.9999695
          %v1184 = vmul.f32 %v1176, 32768.0
          %v1185 = vmul.f32 %v1177, 32768.0
          %v1186 = vmul.f32 %v1178, 32768.0
          %v1187 = vmul.f32 %v1179, 32768.0
          %v1188 = vmul.f32 %v1180, 32768.0
          %v1189 = vmul.f32 %v1181, 32768.0
          %v1190 = vmul.f32 %v1182, 32768.0
          %v1191 = vmul.f32 %v1183, 32768.0
          %vm1192 = vcmp.lt.f32.partialorder %v1184, 0.0
          %vm1193 = vcmp.lt.f32.partialorder %v1185, 0.0
          %vm1194 = vcmp.lt.f32.partialorder %v1186, 0.0
          %vm1195 = vcmp.lt.f32.partialorder %v1187, 0.0
          %vm1196 = vcmp.lt.f32.partialorder %v1188, 0.0
          %vm1197 = vcmp.lt.f32.partialorder %v1189, 0.0
          %vm1198 = vcmp.lt.f32.partialorder %v1190, 0.0
          %vm1199 = vcmp.lt.f32.partialorder %v1191, 0.0
          %v1200 = vceil.f32 %v1184
          %v1201 = vceil.f32 %v1185
          %v1202 = vceil.f32 %v1186
          %v1203 = vceil.f32 %v1187
          %v1204 = vceil.f32 %v1188
          %v1205 = vceil.f32 %v1189
          %v1206 = vceil.f32 %v1190
          %v1207 = vceil.f32 %v1191
          %v1208 = vfloor.f32 %v1184
          %v1209 = vfloor.f32 %v1185
          %v1210 = vfloor.f32 %v1186
          %v1211 = vfloor.f32 %v1187
          %v1212 = vfloor.f32 %v1188
          %v1213 = vfloor.f32 %v1189
          %v1214 = vfloor.f32 %v1190
          %v1215 = vfloor.f32 %v1191
          %v1216 = vsel %vm1192, %v1200, %v1208
          %v1217 = vsel %vm1193, %v1201, %v1209
          %v1218 = vsel %vm1194, %v1202, %v1210
          %v1219 = vsel %vm1195, %v1203, %v1211
          %v1220 = vsel %vm1196, %v1204, %v1212
          %v1221 = vsel %vm1197, %v1205, %v1213
          %v1222 = vsel %vm1198, %v1206, %v1214
          %v1223 = vsel %vm1199, %v1207, %v1215
          %v1224 = vmul.f32 %v1216, -3.0517578e-05
          %v1225 = vmul.f32 %v1217, -3.0517578e-05
          %v1226 = vmul.f32 %v1218, -3.0517578e-05
          %v1227 = vmul.f32 %v1219, -3.0517578e-05
          %v1228 = vmul.f32 %v1220, -3.0517578e-05
          %v1229 = vmul.f32 %v1221, -3.0517578e-05
          %v1230 = vmul.f32 %v1222, -3.0517578e-05
          %v1231 = vmul.f32 %v1223, -3.0517578e-05
          %1232 = vst [vmem:[%s345] sm:$0xff] %v1224
          %1233 = vst [vmem:[%s345 + $0x8] sm:$0xff] %v1225
          %1234 = vst [vmem:[%s345 + $0x10] sm:$0xff] %v1226
          %1235 = vst [vmem:[%s345 + $0x18] sm:$0xff] %v1227
          %1236 = vst [vmem:[%s345 + $0x20] sm:$0xff] %v1228
          %1237 = vst [vmem:[%s345 + $0x28] sm:$0xff] %v1229
          %1238 = vst [vmem:[%s345 + $0x30] sm:$0xff] %v1230
          %1239 = vst [vmem:[%s345 + $0x38] sm:$0xff] %v1231
        $region60: #{tpu_custom_call.1} parent=39 // pred_fallthru
          _
        %s1240 = sand.u32 %s170, 1
        %s1241 = scalar_lea.sflag [#allocation6], %s1240
        %s1242 = sand.u32 %s170, 1
        %s1243 = smul.addr %s1242, 64
        %s1244 = scalar_lea.vmem [#allocation10], %s1243
        // Predicated region
        $region61: #{tpu_custom_call.1} parent=39 // pred_check
          %p1245 = pneg %p180
        $region62: #{tpu_custom_call.1} parent=39 // pred_check_branch
          %1247 = sbr.rel (%p1245) target = $region64
        $region63: #{tpu_custom_call.1} parent=39 // pred_region
          %s1248 = smul.u32 8, %s29
          %s1250 = ssub.s32 1024, 1024
          %1251 = vsyncadd %s1241, %s1250
          %s1252 = smul.addr %s1248, 128
          %s1253 = scalar_lea.hbm %s5, %s1252
          %s1254 = sshll.u32 %s1244, 4
          %s1255 = int_to_ptr.vmem [resolvable:$true] %s1254
          %1260 = dma.vmem_to_hbm [thread:$0]  %s1255, 1024, %s1253, %s1241, 128, 128, 8
        $region64: #{tpu_custom_call.1} parent=39 // pred_fallthru
          _
      $region40: #{tpu_custom_call.1} parent=5 // pred_fallthru
        _
      %p1261 = scmp.le.s32.totalorder 2, %s20
      // Predicated region
      $region65: #{tpu_custom_call.1} parent=5 // pred_check
        %p1262 = pneg %p1261
      $region66: #{tpu_custom_call.1} parent=5 // pred_check_branch
        %1264 = sbr.rel (%p1262) target = $region68
      $region67: #{tpu_custom_call.1} parent=5 // pred_region
        %s1265 = ssub.s32 %s20, 2
        // Predicated region
        $region69: #{tpu_custom_call.1} parent=67 // pred_check
          %p1266 = pneg %p186
        $region70: #{tpu_custom_call.1} parent=67 // pred_check_branch
          %1268 = sbr.rel (%p1266) target = $region72
        $region71: #{tpu_custom_call.1} parent=67 // pred_region
          %s1269 = sand.u32 %s171, 1
          %s1270 = scalar_lea.sflag [#allocation6], %s1269
          %s1271 = sand.u32 %s171, 1
          %s1272 = smul.addr %s1271, 64
          %s1273 = scalar_lea.vmem [#allocation10], %s1272
          %1274 = dma.done %s1270, 1024
        $region72: #{tpu_custom_call.1} parent=67 // pred_fallthru
          _
      $region68: #{tpu_custom_call.1} parent=5 // pred_fallthru
        _
    $region6: #{tpu_custom_call.1} parent=1 // loop_footer
      %s24 = sadd.s32 1, %s20
    $region7: #{tpu_custom_call.1} parent=1 // loop_footer_branch
      %19 = sbr.rel target = $region3
    $region8: #{tpu_custom_call.1} parent=1 // loop_exit
      _
    %1275 = vsyncpa [#allocation5], 1
    %s1276 = scalar_lea.sflag [#allocation5], 1
    %1277 = vsyncpa %s1276, 1
    %1278 = vsyncpa [#allocation8], 1
    %s1279 = scalar_lea.sflag [#allocation8], 1
    %1280 = vsyncpa %s1279, 1
    %1281 = vsyncpa [#allocation6], 1
    %s1282 = scalar_lea.sflag [#allocation6], 1
    %1283 = vsyncpa %s1282, 1

</llo_original>
